<compile_context>
chip_gen: v7x
topology: tpu7x:2x2x1
jax: 0.10.0
libtpu: 0.0.40
codegen_flags: <defaults>
</compile_context>

<pallas_src>
import jax
import jax.numpy as jnp
from jax import lax
from jax.experimental import pallas as pl
from jax.experimental.pallas import tpu as pltpu

EPS = 1e-5


def _vmem_limit_bytes():
    """Scoped-VMEM limit derived from the chip's physical VMEM (gen-aware)."""
    cap = 64 * 1024 * 1024  # conservative (v7x-sized) fallback if query fails
    try:
        cap = int(pltpu.get_tpu_info().vmem_capacity_bytes)
    except Exception:
        pass
    # ~25% headroom: 48 MiB on v7x (64 MiB VMEM), 96 MiB on v5e/v6e (128 MiB).
    return (cap // 4) * 3


def _pick_block_h(H, N, WC, WCo, weight_bytes, vmem_limit):
    """Largest multiple-of-8 strip height dividing H that fits the VMEM budget
    while keeping N * num_strips >= 4 grid steps (megacore / pipelining)."""
    min_strips = max(2, -(-4 // max(N, 1)))
    max_th = max(8, ((H // min_strips) // 8) * 8)
    th = 8
    for cand in range(8, max_th + 1, 8):
        if H % cand:
            continue
        need = (2 * (cand + 16) * WC * 4          # input strip + halos, 2 bufs
                + 2 * cand * WCo * 4              # output tile, 2 bufs
                + int(weight_bytes)               # (single-buffered) weights
                + 6 * cand * max(WC, WCo) * 4)    # live-temporary headroom
        if need <= vmem_limit - (4 << 20):
            th = cand
    return th


def depthwise_separable_conv_nhwc(x_nhwc, folded, *, stride=1, use_bf16=True,
                                  block_h=None, out_dtype=jnp.float32):
    """x_nhwc: (N, H, W, C) float32 -> (N, H, W, Co) out_dtype (NHWC path)."""
    assert stride == 1  # TODO(synk): stride>1 needs strided row/lane selection
    N, H, W, C = x_nhwc.shape
    WC = W * C
    WCo = folded["s_pw"].shape[-1]
    assert WCo % W == 0
    Co = WCo // W
    assert folded["w_dw"].shape == (3, 3, WC), "fold_params width mismatch"
    # TODO(synk): pad H to a multiple of 8 for heights that are not 8-aligned.
    assert H % 8 == 0, "kernel assumes H is a multiple of 8"

    mm_dtype = jnp.bfloat16 if use_bf16 else jnp.float32
    w_dw = folded["w_dw"].astype(jnp.float32)         # (3, 3, W*C), edge-masked
    s_dw = folded["s_dw"].astype(jnp.float32)         # (1, W*C)
    w_pw = folded["w_pw"].astype(mm_dtype)            # (W*C, W*Co), block-diag
    s_pw = folded["s_pw"].astype(jnp.float32)         # (1, W*Co)

    weight_bytes = (w_dw.size * 4 + s_dw.size * 4 + s_pw.size * 4
                    + w_pw.size * w_pw.dtype.itemsize)
    vmem_limit = _vmem_limit_bytes()
    TH = block_h if block_h is not None else _pick_block_h(
        H, N, WC, WCo, weight_bytes, vmem_limit)
    assert TH % 8 == 0 and H % TH == 0
    NS = H // TH          # number of row strips (grid axis 1)
    SB = TH // 8          # 8-row sub-blocks per strip
    H8 = H // 8

    x2d = x_nhwc.reshape(N, H, WC)                    # free row-major reshape

    def kernel(xc_ref, xt_ref, xb_ref, wdw_ref, sdw_ref, wpw_ref, spw_ref,
               o_ref):
        h = pl.program_id(1)

        # ---- assemble the (TH+2)-row halo strip; halo rows falling outside
        # the image are zeroed (the vertical half of padding=1; the horizontal
        # half is folded into the depthwise weights in fold_params).
        x = xc_ref[0]                                             # (TH, WC)
        top = xt_ref[0, 7:8, :] * (h > 0).astype(jnp.float32)     # (1, WC)
        bot = xb_ref[0, 0:1, :] * (h < NS - 1).astype(jnp.float32)
        xx = jnp.concatenate([top, x, bot], axis=0)               # (TH+2, WC)

        # ---- 9-tap depthwise accumulate: one sublane slice per dy, west/east
        # taps via XLU lane rotations; wrap-around lanes are killed by the
        # zeroed edge taps already baked into wdw (no iota/compare/select).
        wdw = wdw_ref[...]                                        # (3, 3, WC)
        acc = jnp.zeros((TH, WC), jnp.float32)
        for dy in range(3):
            row = xx[dy:dy + TH, :]                               # (TH, WC)
            acc = acc + pltpu.roll(row, C, axis=1) * wdw[dy, 0]        # west
            acc = acc + row * wdw[dy, 1]                               # centre
            acc = acc + pltpu.roll(row, WC - C, axis=1) * wdw[dy, 2]   # east
        dw = jnp.maximum(acc + sdw_ref[...], 0.0)                 # BN + ReLU

        # ---- pointwise 1x1 conv: block-diagonal matmul on the MXU (bf16
        # operands, f32 accumulation), lane-dense (TH, W*Co) output tile.
        pw = jnp.dot(dw.astype(wpw_ref.dtype), wpw_ref[...],
                     preferred_element_type=jnp.float32)
        pw = jnp.maximum(pw + spw_ref[...], 0.0)                  # BN + ReLU
        o_ref[0] = pw.astype(o_ref.dtype)

    # NOTE: flops counts the kron path's W-fold zero-padding FLOPs — this is
    # the actual MXU work for this layout; recompute for a (TH*W,C)@(C,Co) path.
    flops = N * H * (18 * WC + 2 * WC * WCo)
    out_isize = jnp.dtype(out_dtype).itemsize
    bytes_accessed = (4 * N * H * WC              # input strips
                      + 4 * N * NS * 16 * WC      # 8-row halo refetch
                      + out_isize * N * H * WCo   # output
                      + int(weight_bytes))        # weights / shifts

    def build(single_buffer_weights):
        def const_spec(shape):
            kwargs = {}
            if single_buffer_weights:
                kwargs["pipeline_mode"] = pl.Buffered(1)
            return pl.BlockSpec(shape, lambda n, h: (0,) * len(shape), **kwargs)

        return pl.pallas_call(
            kernel,
            out_shape=jax.ShapeDtypeStruct((N, H, WCo), out_dtype),
            grid=(N, NS),
            in_specs=[
                # current TH-row strip
                pl.BlockSpec((1, TH, WC), lambda n, h: (n, h, 0)),
                # 8-row block containing the row just above the strip (clamped)
                pl.BlockSpec((1, 8, WC),
                             lambda n, h: (n, jnp.maximum(h * SB - 1, 0), 0)),
                # 8-row block containing the row just below the strip (clamped)
                pl.BlockSpec((1, 8, WC),
                             lambda n, h: (n, jnp.minimum((h + 1) * SB, H8 - 1),
                                           0)),
                const_spec((3, 3, WC)),
                const_spec((1, WC)),
                const_spec((WC, WCo)),
                const_spec((1, WCo)),
            ],
            out_specs=pl.BlockSpec((1, TH, WCo), lambda n, h: (n, h, 0)),
            compiler_params=pltpu.CompilerParams(
                dimension_semantics=("parallel", "parallel"),
                vmem_limit_bytes=int(vmem_limit)),
            cost_estimate=pl.CostEstimate(flops=int(flops), transcendentals=0,
                                          bytes_accessed=int(bytes_accessed)),
        )

    try:
        out2d = build(True)(x2d, x2d, x2d, w_dw, s_dw, w_pw, s_pw)
    except Exception:
        # pl.Buffered(1) unsupported on this JAX/Pallas build — fall back to
        # default double-buffered constant blocks (correctness unaffected).
        out2d = build(False)(x2d, x2d, x2d, w_dw, s_dw, w_pw, s_pw)

    return out2d.reshape(N, H, W, Co)


def depthwise_separable_conv(x_nchw, folded, *, stride=1, use_bf16=True,
                             block_h=None, out_dtype=jnp.float32):
    """NCHW shim matching the PyTorch module: (N, C, H, W) -> (N, Co, H, W)."""
    x_nhwc = jnp.transpose(x_nchw, (0, 2, 3, 1))
    y = depthwise_separable_conv_nhwc(x_nhwc, folded, stride=stride,
                                      use_bf16=use_bf16, block_h=block_h,
                                      out_dtype=out_dtype)
    return jnp.transpose(y, (0, 3, 1, 2))


def init_raw_params(key, in_ch, out_ch):
    ks = jax.random.split(key, 10)
    raw = {
        # depthwise conv: weight (C,1,3,3), bias (C,)
        "w_dw": 0.1 * jax.random.normal(ks[0], (in_ch, 1, 3, 3), jnp.float32),
        "b_dw": 0.1 * jax.random.normal(ks[1], (in_ch,), jnp.float32),
        # depthwise BN (eval): gamma, beta, running mean/var
        "g_dw": 1.0 + 0.1 * jax.random.normal(ks[2], (in_ch,), jnp.float32),
        "bt_dw": 0.1 * jax.random.normal(ks[3], (in_ch,), jnp.float32),
        "m_dw": 0.1 * jax.random.normal(ks[4], (in_ch,), jnp.float32),
        "v_dw": 1.0 + 0.5 * jax.random.uniform(ks[5], (in_ch,), jnp.float32),
        # pointwise conv: weight (Co,C,1,1), bias (Co,)
        "w_pw": 0.1 * jax.random.normal(ks[6], (out_ch, in_ch, 1, 1),
                                        jnp.float32),
        "b_pw": 0.1 * jax.random.normal(ks[7], (out_ch,), jnp.float32),
        # pointwise BN (eval)
        "g_pw": 1.0 + 0.1 * jax.random.normal(ks[8], (out_ch,), jnp.float32),
        "bt_pw": 0.1 * jax.random.normal(ks[9], (out_ch,), jnp.float32),
        "m_pw": jnp.zeros((out_ch,), jnp.float32),
        "v_pw": jnp.ones((out_ch,), jnp.float32),
    }
    return raw


def fold_params(raw, width):
    """Fold conv bias + eval-mode BN into weights/shifts and lane-pack them.

    Layout produced for the kernel's (N, H, W*C) view:
      w_dw: (3, 3, W*C)    depthwise taps tiled across W, with pixel-0's west
                           taps and pixel-(W-1)'s east taps zeroed (this *is*
                           the horizontal padding=1 of the depthwise conv)
      s_dw: (1, W*C)       depthwise bias + BN shift
      w_pw: (W*C, W*Co)    block-diagonal kron(I_W, pointwise weight)
      s_pw: (1, W*Co)      pointwise bias + BN shift
    # TODO(synk): for large C*Co*W^2 the kron weight gets big; switch to a
    # channels-on-lanes (H*W, C) @ (C, Co) matmul path for production widths.
    """
    W = width
    scale_dw = raw["g_dw"] / jnp.sqrt(raw["v_dw"] + EPS)                 # (C,)
    w_dw = jnp.transpose(raw["w_dw"][:, 0], (1, 2, 0)) * scale_dw        # (3,3,C)
    s_dw = raw["bt_dw"] + (raw["b_dw"] - raw["m_dw"]) * scale_dw         # (C,)
    scale_pw = raw["g_pw"] / jnp.sqrt(raw["v_pw"] + EPS)                 # (Co,)
    w_pw = jnp.transpose(raw["w_pw"][:, :, 0, 0], (1, 0)) * scale_pw     # (C,Co)
    s_pw = raw["bt_pw"] + (raw["b_pw"] - raw["m_pw"]) * scale_pw         # (Co,)

    C = w_dw.shape[-1]
    w_dw_t = jnp.tile(w_dw, (1, 1, W))                                   # (3,3,W*C)
    lane = jnp.arange(W * C)
    mask_w = (lane >= C).astype(jnp.float32)[None, :]          # kill pixel-0 west
    mask_e = (lane < (W - 1) * C).astype(jnp.float32)[None, :]  # kill last east
    w_dw_t = jnp.stack([w_dw_t[:, 0, :] * mask_w,
                        w_dw_t[:, 1, :],
                        w_dw_t[:, 2, :] * mask_e], axis=1)               # (3,3,W*C)

    return {
        "w_dw": w_dw_t.astype(jnp.float32),                              # (3,3,W*C)
        "s_dw": jnp.tile(s_dw, (W,))[None, :].astype(jnp.float32),       # (1,W*C)
        "w_pw": jnp.kron(jnp.eye(W, dtype=jnp.float32),
                         w_pw).astype(jnp.float32),                      # (W*C,W*Co)
        "s_pw": jnp.tile(s_pw, (W,))[None, :].astype(jnp.float32),       # (1,W*Co)
    }


def reference(x, raw):
    """Pure-JAX replica of the PyTorch forward (eval-mode BN), NCHW."""
    y = lax.conv_general_dilated(
        x, raw["w_dw"], window_strides=(1, 1), padding=((1, 1), (1, 1)),
        dimension_numbers=("NCHW", "OIHW", "NCHW"),
        feature_group_count=x.shape[1])
    y = y + raw["b_dw"][None, :, None, None]
    y = ((y - raw["m_dw"][None, :, None, None])
         / jnp.sqrt(raw["v_dw"][None, :, None, None] + EPS)
         * raw["g_dw"][None, :, None, None] + raw["bt_dw"][None, :, None, None])
    y = jnp.maximum(y, 0.0)

    z = lax.conv_general_dilated(
        y, raw["w_pw"], window_strides=(1, 1), padding=((0, 0), (0, 0)),
        dimension_numbers=("NCHW", "OIHW", "NCHW"))
    z = z + raw["b_pw"][None, :, None, None]
    z = ((z - raw["m_pw"][None, :, None, None])
         / jnp.sqrt(raw["v_pw"][None, :, None, None] + EPS)
         * raw["g_pw"][None, :, None, None] + raw["bt_pw"][None, :, None, None])
    return jnp.maximum(z, 0.0)


if __name__ == "__main__":
    N, C, H, W, CO = 2, 4, 16, 16, 8

    key = jax.random.PRNGKey(0)
    k_x, k_p = jax.random.split(key)
    x = jax.random.normal(k_x, (N, C, H, W), jnp.float32)
    raw = init_raw_params(k_p, C, CO)
    folded = fold_params(raw, W)

    ref = jax.block_until_ready(reference(x, raw))

    # strict f32 MXU path
    out_f32 = jax.block_until_ready(
        depthwise_separable_conv(x, folded, use_bf16=False))
    assert out_f32.shape == (N, CO, H, W)
    assert jnp.allclose(out_f32, ref, rtol=1e-4, atol=1e-4), "fp32 path mismatch"

    # default path: bf16 MXU operands, f32 accumulation (looser tolerance)
    out = jax.block_until_ready(depthwise_separable_conv(x, folded))
    assert out.shape == (N, CO, H, W)
    assert jnp.allclose(out, ref, rtol=5e-2, atol=5e-2), "bf16 path mismatch"

    print("KERNEL_OK")
</pallas_src>

<mosaic_0001>
module attributes {stable_mosaic.version = 11 : i64} {
  func.func @kernel(%arg0: i32, %arg1: i32, %arg2: memref<1x8x64xf32, #tpu.memory_space<vmem>>, %arg3: memref<1x8x64xf32, #tpu.memory_space<vmem>>, %arg4: memref<1x8x64xf32, #tpu.memory_space<vmem>>, %arg5: memref<3x3x64xf32, #tpu.memory_space<vmem>>, %arg6: memref<1x64xf32, #tpu.memory_space<vmem>>, %arg7: memref<64x128xf32, #tpu.memory_space<vmem>>, %arg8: memref<1x128xf32, #tpu.memory_space<vmem>>, %arg9: memref<1x8x128xf32, #tpu.memory_space<vmem>>) attributes {dimension_semantics = [#tpu.dimension_semantics<parallel>, #tpu.dimension_semantics<parallel>], iteration_bounds = array<i64: 2, 2>, scalar_prefetch = 0 : i64, scratch_operands = 0 : i64, tpu.core_type = #tpu.core_type<tc>, window_params = [{transform_indices = @transform_0, window_bounds = array<i64: 1, 8, 64>}, {transform_indices = @transform_1, window_bounds = array<i64: 1, 8, 64>}, {transform_indices = @transform_2, window_bounds = array<i64: 1, 8, 64>}, {pipeline_mode = #tpu.pipeline_mode<synchronous>, transform_indices = @transform_3, window_bounds = array<i64: 3, 3, 64>}, {pipeline_mode = #tpu.pipeline_mode<synchronous>, transform_indices = @transform_4, window_bounds = array<i64: 1, 64>}, {pipeline_mode = #tpu.pipeline_mode<synchronous>, transform_indices = @transform_5, window_bounds = array<i64: 64, 128>}, {pipeline_mode = #tpu.pipeline_mode<synchronous>, transform_indices = @transform_6, window_bounds = array<i64: 1, 128>}, {transform_indices = @transform_7, window_bounds = array<i64: 1, 8, 128>}]} {
    %c0 = arith.constant 0 : index
    %c0_0 = arith.constant 0 : index
    %c0_1 = arith.constant 0 : index
    %0 = vector.load %arg2[%c0, %c0_0, %c0_1] : memref<1x8x64xf32, #tpu.memory_space<vmem>>, vector<1x8x64xf32>
    %1 = vector.shape_cast %0 : vector<1x8x64xf32> to vector<8x64xf32>
    %c0_2 = arith.constant 0 : index
    %c7 = arith.constant 7 : index
    %c0_3 = arith.constant 0 : index
    %2 = vector.load %arg3[%c0_2, %c7, %c0_3] : memref<1x8x64xf32, #tpu.memory_space<vmem>>, vector<1x1x64xf32>
    %3 = vector.shape_cast %2 : vector<1x1x64xf32> to vector<1x64xf32>
    %c0_i32 = arith.constant 0 : i32
    %4 = arith.cmpi sgt, %arg1, %c0_i32 : i32
    %5 = arith.extui %4 : i1 to i32
    %6 = arith.sitofp %5 : i32 to f32
    %7 = vector.broadcast %6 : f32 to vector<1x64xf32>
    %8 = arith.mulf %3, %7 : vector<1x64xf32>
    %c0_4 = arith.constant 0 : index
    %c0_5 = arith.constant 0 : index
    %c0_6 = arith.constant 0 : index
    %9 = vector.load %arg4[%c0_4, %c0_5, %c0_6] : memref<1x8x64xf32, #tpu.memory_space<vmem>>, vector<1x1x64xf32>
    %10 = vector.shape_cast %9 : vector<1x1x64xf32> to vector<1x64xf32>
    %c1_i32 = arith.constant 1 : i32
    %11 = arith.cmpi slt, %arg1, %c1_i32 : i32
    %12 = arith.extui %11 : i1 to i32
    %13 = arith.sitofp %12 : i32 to f32
    %14 = vector.broadcast %13 : f32 to vector<1x64xf32>
    %15 = arith.mulf %10, %14 : vector<1x64xf32>
    %16 = tpu.concatenate %8, %1, %15 in 0 : vector<1x64xf32>, vector<8x64xf32>, vector<1x64xf32> -> vector<10x64xf32>
    %c0_7 = arith.constant 0 : index
    %c0_8 = arith.constant 0 : index
    %c0_9 = arith.constant 0 : index
    %17 = vector.load %arg5[%c0_7, %c0_8, %c0_9] : memref<3x3x64xf32, #tpu.memory_space<vmem>>, vector<3x3x64xf32>
    %cst = arith.constant 0.000000e+00 : f32
    %18 = vector.broadcast %cst : f32 to vector<8x64xf32>
    %19 = vector.extract_strided_slice %16 {offsets = [0, 0], sizes = [8, 64], strides = [1, 1]} : vector<10x64xf32> to vector<8x64xf32>
    %c4_i32 = arith.constant 4 : i32
    %20 = tpu.dynamic_rotate %19 by %c4_i32 dim 1 : vector<8x64xf32>, i32 -> vector<8x64xf32>
    %21 = vector.extract_strided_slice %17 {offsets = [0, 0, 0], sizes = [1, 1, 64], strides = [1, 1, 1]} : vector<3x3x64xf32> to vector<1x1x64xf32>
    %22 = vector.shape_cast %21 : vector<1x1x64xf32> to vector<64xf32>
    %23 = vector.shape_cast %22 : vector<64xf32> to vector<1x64xf32>
    %24 = vector.broadcast %23 : vector<1x64xf32> to vector<8x64xf32>
    %25 = arith.mulf %20, %24 : vector<8x64xf32>
    %26 = arith.addf %18, %25 : vector<8x64xf32>
    %27 = vector.extract_strided_slice %17 {offsets = [0, 1, 0], sizes = [1, 1, 64], strides = [1, 1, 1]} : vector<3x3x64xf32> to vector<1x1x64xf32>
    %28 = vector.shape_cast %27 : vector<1x1x64xf32> to vector<64xf32>
    %29 = vector.shape_cast %28 : vector<64xf32> to vector<1x64xf32>
    %30 = vector.broadcast %29 : vector<1x64xf32> to vector<8x64xf32>
    %31 = arith.mulf %19, %30 : vector<8x64xf32>
    %32 = arith.addf %26, %31 : vector<8x64xf32>
    %c60_i32 = arith.constant 60 : i32
    %33 = tpu.dynamic_rotate %19 by %c60_i32 dim 1 : vector<8x64xf32>, i32 -> vector<8x64xf32>
    %34 = vector.extract_strided_slice %17 {offsets = [0, 2, 0], sizes = [1, 1, 64], strides = [1, 1, 1]} : vector<3x3x64xf32> to vector<1x1x64xf32>
    %35 = vector.shape_cast %34 : vector<1x1x64xf32> to vector<64xf32>
    %36 = vector.shape_cast %35 : vector<64xf32> to vector<1x64xf32>
    %37 = vector.broadcast %36 : vector<1x64xf32> to vector<8x64xf32>
    %38 = arith.mulf %33, %37 : vector<8x64xf32>
    %39 = arith.addf %32, %38 : vector<8x64xf32>
    %40 = vector.extract_strided_slice %16 {offsets = [1, 0], sizes = [8, 64], strides = [1, 1]} : vector<10x64xf32> to vector<8x64xf32>
    %c4_i32_10 = arith.constant 4 : i32
    %41 = tpu.dynamic_rotate %40 by %c4_i32_10 dim 1 : vector<8x64xf32>, i32 -> vector<8x64xf32>
    %42 = vector.extract_strided_slice %17 {offsets = [1, 0, 0], sizes = [1, 1, 64], strides = [1, 1, 1]} : vector<3x3x64xf32> to vector<1x1x64xf32>
    %43 = vector.shape_cast %42 : vector<1x1x64xf32> to vector<64xf32>
    %44 = vector.shape_cast %43 : vector<64xf32> to vector<1x64xf32>
    %45 = vector.broadcast %44 : vector<1x64xf32> to vector<8x64xf32>
    %46 = arith.mulf %41, %45 : vector<8x64xf32>
    %47 = arith.addf %39, %46 : vector<8x64xf32>
    %48 = vector.extract_strided_slice %17 {offsets = [1, 1, 0], sizes = [1, 1, 64], strides = [1, 1, 1]} : vector<3x3x64xf32> to vector<1x1x64xf32>
    %49 = vector.shape_cast %48 : vector<1x1x64xf32> to vector<64xf32>
    %50 = vector.shape_cast %49 : vector<64xf32> to vector<1x64xf32>
    %51 = vector.broadcast %50 : vector<1x64xf32> to vector<8x64xf32>
    %52 = arith.mulf %40, %51 : vector<8x64xf32>
    %53 = arith.addf %47, %52 : vector<8x64xf32>
    %c60_i32_11 = arith.constant 60 : i32
    %54 = tpu.dynamic_rotate %40 by %c60_i32_11 dim 1 : vector<8x64xf32>, i32 -> vector<8x64xf32>
    %55 = vector.extract_strided_slice %17 {offsets = [1, 2, 0], sizes = [1, 1, 64], strides = [1, 1, 1]} : vector<3x3x64xf32> to vector<1x1x64xf32>
    %56 = vector.shape_cast %55 : vector<1x1x64xf32> to vector<64xf32>
    %57 = vector.shape_cast %56 : vector<64xf32> to vector<1x64xf32>
    %58 = vector.broadcast %57 : vector<1x64xf32> to vector<8x64xf32>
    %59 = arith.mulf %54, %58 : vector<8x64xf32>
    %60 = arith.addf %53, %59 : vector<8x64xf32>
    %61 = vector.extract_strided_slice %16 {offsets = [2, 0], sizes = [8, 64], strides = [1, 1]} : vector<10x64xf32> to vector<8x64xf32>
    %c4_i32_12 = arith.constant 4 : i32
    %62 = tpu.dynamic_rotate %61 by %c4_i32_12 dim 1 : vector<8x64xf32>, i32 -> vector<8x64xf32>
    %63 = vector.extract_strided_slice %17 {offsets = [2, 0, 0], sizes = [1, 1, 64], strides = [1, 1, 1]} : vector<3x3x64xf32> to vector<1x1x64xf32>
    %64 = vector.shape_cast %63 : vector<1x1x64xf32> to vector<64xf32>
    %65 = vector.shape_cast %64 : vector<64xf32> to vector<1x64xf32>
    %66 = vector.broadcast %65 : vector<1x64xf32> to vector<8x64xf32>
    %67 = arith.mulf %62, %66 : vector<8x64xf32>
    %68 = arith.addf %60, %67 : vector<8x64xf32>
    %69 = vector.extract_strided_slice %17 {offsets = [2, 1, 0], sizes = [1, 1, 64], strides = [1, 1, 1]} : vector<3x3x64xf32> to vector<1x1x64xf32>
    %70 = vector.shape_cast %69 : vector<1x1x64xf32> to vector<64xf32>
    %71 = vector.shape_cast %70 : vector<64xf32> to vector<1x64xf32>
    %72 = vector.broadcast %71 : vector<1x64xf32> to vector<8x64xf32>
    %73 = arith.mulf %61, %72 : vector<8x64xf32>
    %74 = arith.addf %68, %73 : vector<8x64xf32>
    %c60_i32_13 = arith.constant 60 : i32
    %75 = tpu.dynamic_rotate %61 by %c60_i32_13 dim 1 : vector<8x64xf32>, i32 -> vector<8x64xf32>
    %76 = vector.extract_strided_slice %17 {offsets = [2, 2, 0], sizes = [1, 1, 64], strides = [1, 1, 1]} : vector<3x3x64xf32> to vector<1x1x64xf32>
    %77 = vector.shape_cast %76 : vector<1x1x64xf32> to vector<64xf32>
    %78 = vector.shape_cast %77 : vector<64xf32> to vector<1x64xf32>
    %79 = vector.broadcast %78 : vector<1x64xf32> to vector<8x64xf32>
    %80 = arith.mulf %75, %79 : vector<8x64xf32>
    %81 = arith.addf %74, %80 : vector<8x64xf32>
    %c0_14 = arith.constant 0 : index
    %c0_15 = arith.constant 0 : index
    %82 = vector.load %arg6[%c0_14, %c0_15] : memref<1x64xf32, #tpu.memory_space<vmem>>, vector<1x64xf32>
    %83 = vector.broadcast %82 : vector<1x64xf32> to vector<8x64xf32>
    %84 = arith.addf %81, %83 : vector<8x64xf32>
    %cst_16 = arith.constant 0.000000e+00 : f32
    %85 = vector.broadcast %cst_16 : f32 to vector<8x64xf32>
    %86 = arith.maximumf %84, %85 : vector<8x64xf32>
    %c0_17 = arith.constant 0 : index
    %c0_18 = arith.constant 0 : index
    %87 = vector.load %arg7[%c0_17, %c0_18] : memref<64x128xf32, #tpu.memory_space<vmem>>, vector<64x128xf32>
    %cst_19 = arith.constant dense<0.000000e+00> : vector<8x128xf32>
    %88 = tpu.matmul %86, %87, %cst_19 {dimension_numbers = #tpu.dot_dimension_numbers<[1], [0], [0], [1], [0, 0, 1, 1], [], []>} : vector<8x64xf32>, vector<64x128xf32>, vector<8x128xf32> -> vector<8x128xf32>
    %c0_20 = arith.constant 0 : index
    %c0_21 = arith.constant 0 : index
    %89 = vector.load %arg8[%c0_20, %c0_21] : memref<1x128xf32, #tpu.memory_space<vmem>>, vector<1x128xf32>
    %90 = vector.broadcast %89 : vector<1x128xf32> to vector<8x128xf32>
    %91 = arith.addf %88, %90 : vector<8x128xf32>
    %cst_22 = arith.constant 0.000000e+00 : f32
    %92 = vector.broadcast %cst_22 : f32 to vector<8x128xf32>
    %93 = arith.maximumf %91, %92 : vector<8x128xf32>
    %c0_23 = arith.constant 0 : index
    %c0_24 = arith.constant 0 : index
    %c0_25 = arith.constant 0 : index
    %94 = vector.load %arg9[%c0_23, %c0_24, %c0_25] : memref<1x8x128xf32, #tpu.memory_space<vmem>>, vector<1x8x128xf32>
    %95 = vector.shape_cast %94 : vector<1x8x128xf32> to vector<8x128xf32>
    %96 = vector.shape_cast %93 : vector<8x128xf32> to vector<1x8x128xf32>
    tpu.vector_store %arg9[%c0_23, %c0_24, %c0_25], %96 {strides = array<i32>} : memref<1x8x128xf32, #tpu.memory_space<vmem>>, vector<1x8x128xf32>,
    return
  }
  func.func @transform_0(%arg0: i32, %arg1: i32) -> (i32, i32, i32) {
    %c0_i32 = arith.constant 0 : i32
    %c0_i32_0 = arith.constant 0 : i32
    return %arg0, %arg1, %c0_i32 : i32, i32, i32
  }
  func.func @transform_1(%arg0: i32, %arg1: i32) -> (i32, i32, i32) {
    %c1_i32 = arith.constant 1 : i32
    %0 = arith.muli %arg1, %c1_i32 : i32
    %c1_i32_0 = arith.constant 1 : i32
    %1 = arith.subi %0, %c1_i32_0 : i32
    %c0_i32 = arith.constant 0 : i32
    %2 = arith.maxsi %1, %c0_i32 : i32
    %c0_i32_1 = arith.constant 0 : i32
    %c0_i32_2 = arith.constant 0 : i32
    return %arg0, %2, %c0_i32_1 : i32, i32, i32
  }
  func.func @transform_2(%arg0: i32, %arg1: i32) -> (i32, i32, i32) {
    %c1_i32 = arith.constant 1 : i32
    %0 = arith.addi %arg1, %c1_i32 : i32
    %c1_i32_0 = arith.constant 1 : i32
    %1 = arith.muli %0, %c1_i32_0 : i32
    %c1_i32_1 = arith.constant 1 : i32
    %2 = arith.minsi %1, %c1_i32_1 : i32
    %c0_i32 = arith.constant 0 : i32
    %c0_i32_2 = arith.constant 0 : i32
    return %arg0, %2, %c0_i32 : i32, i32, i32
  }
  func.func @transform_3(%arg0: i32, %arg1: i32) -> (i32, i32, i32) {
    %c0_i32 = arith.constant 0 : i32
    %c0_i32_0 = arith.constant 0 : i32
    %c0_i32_1 = arith.constant 0 : i32
    %c0_i32_2 = arith.constant 0 : i32
    return %c0_i32, %c0_i32_0, %c0_i32_1 : i32, i32, i32
  }
  func.func @transform_4(%arg0: i32, %arg1: i32) -> (i32, i32) {
    %c0_i32 = arith.constant 0 : i32
    %c0_i32_0 = arith.constant 0 : i32
    %c0_i32_1 = arith.constant 0 : i32
    return %c0_i32, %c0_i32_0 : i32, i32
  }
  func.func @transform_5(%arg0: i32, %arg1: i32) -> (i32, i32) {
    %c0_i32 = arith.constant 0 : i32
    %c0_i32_0 = arith.constant 0 : i32
    %c0_i32_1 = arith.constant 0 : i32
    return %c0_i32, %c0_i32_0 : i32, i32
  }
  func.func @transform_6(%arg0: i32, %arg1: i32) -> (i32, i32) {
    %c0_i32 = arith.constant 0 : i32
    %c0_i32_0 = arith.constant 0 : i32
    %c0_i32_1 = arith.constant 0 : i32
    return %c0_i32, %c0_i32_0 : i32, i32
  }
  func.func @transform_7(%arg0: i32, %arg1: i32) -> (i32, i32, i32) {
    %c0_i32 = arith.constant 0 : i32
    %c0_i32_0 = arith.constant 0 : i32
    return %arg0, %arg1, %c0_i32 : i32, i32, i32
  }
}

module attributes {stable_mosaic.version = 11 : i64} {
  func.func @kernel(%arg0: i32, %arg1: i32, %arg2: memref<1x8x64xf32, #tpu.memory_space<vmem>>, %arg3: memref<1x8x64xf32, #tpu.memory_space<vmem>>, %arg4: memref<1x8x64xf32, #tpu.memory_space<vmem>>, %arg5: memref<3x3x64xf32, #tpu.memory_space<vmem>>, %arg6: memref<1x64xf32, #tpu.memory_space<vmem>>, %arg7: memref<64x128xf32, #tpu.memory_space<vmem>>, %arg8: memref<1x128xf32, #tpu.memory_space<vmem>>, %arg9: memref<1x8x128xf32, #tpu.memory_space<vmem>>) attributes {dimension_semantics = [#tpu.dimension_semantics<parallel>, #tpu.dimension_semantics<parallel>], iteration_bounds = array<i64: 2, 2>, scalar_prefetch = 0 : i64, scratch_operands = 0 : i64, tpu.core_type = #tpu.core_type<tc>, window_params = [{transform_indices = @transform_0, window_bounds = array<i64: 1, 8, 64>}, {transform_indices = @transform_1, window_bounds = array<i64: 1, 8, 64>}, {transform_indices = @transform_2, window_bounds = array<i64: 1, 8, 64>}, {pipeline_mode = #tpu.pipeline_mode<synchronous>, transform_indices = @transform_3, window_bounds = array<i64: 3, 3, 64>}, {pipeline_mode = #tpu.pipeline_mode<synchronous>, transform_indices = @transform_4, window_bounds = array<i64: 1, 64>}, {pipeline_mode = #tpu.pipeline_mode<synchronous>, transform_indices = @transform_5, window_bounds = array<i64: 64, 128>}, {pipeline_mode = #tpu.pipeline_mode<synchronous>, transform_indices = @transform_6, window_bounds = array<i64: 1, 128>}, {transform_indices = @transform_7, window_bounds = array<i64: 1, 8, 128>}]} {
    %c0 = arith.constant 0 : index
    %c0_0 = arith.constant 0 : index
    %c0_1 = arith.constant 0 : index
    %0 = vector.load %arg2[%c0, %c0_0, %c0_1] : memref<1x8x64xf32, #tpu.memory_space<vmem>>, vector<1x8x64xf32>
    %1 = vector.shape_cast %0 : vector<1x8x64xf32> to vector<8x64xf32>
    %c0_2 = arith.constant 0 : index
    %c7 = arith.constant 7 : index
    %c0_3 = arith.constant 0 : index
    %2 = vector.load %arg3[%c0_2, %c7, %c0_3] : memref<1x8x64xf32, #tpu.memory_space<vmem>>, vector<1x1x64xf32>
    %3 = vector.shape_cast %2 : vector<1x1x64xf32> to vector<1x64xf32>
    %c0_i32 = arith.constant 0 : i32
    %4 = arith.cmpi sgt, %arg1, %c0_i32 : i32
    %5 = arith.extui %4 : i1 to i32
    %6 = arith.sitofp %5 : i32 to f32
    %7 = vector.broadcast %6 : f32 to vector<1x64xf32>
    %8 = arith.mulf %3, %7 : vector<1x64xf32>
    %c0_4 = arith.constant 0 : index
    %c0_5 = arith.constant 0 : index
    %c0_6 = arith.constant 0 : index
    %9 = vector.load %arg4[%c0_4, %c0_5, %c0_6] : memref<1x8x64xf32, #tpu.memory_space<vmem>>, vector<1x1x64xf32>
    %10 = vector.shape_cast %9 : vector<1x1x64xf32> to vector<1x64xf32>
    %c1_i32 = arith.constant 1 : i32
    %11 = arith.cmpi slt, %arg1, %c1_i32 : i32
    %12 = arith.extui %11 : i1 to i32
    %13 = arith.sitofp %12 : i32 to f32
    %14 = vector.broadcast %13 : f32 to vector<1x64xf32>
    %15 = arith.mulf %10, %14 : vector<1x64xf32>
    %16 = tpu.concatenate %8, %1, %15 in 0 : vector<1x64xf32>, vector<8x64xf32>, vector<1x64xf32> -> vector<10x64xf32>
    %c0_7 = arith.constant 0 : index
    %c0_8 = arith.constant 0 : index
    %c0_9 = arith.constant 0 : index
    %17 = vector.load %arg5[%c0_7, %c0_8, %c0_9] : memref<3x3x64xf32, #tpu.memory_space<vmem>>, vector<3x3x64xf32>
    %cst = arith.constant 0.000000e+00 : f32
    %18 = vector.broadcast %cst : f32 to vector<8x64xf32>
    %19 = vector.extract_strided_slice %16 {offsets = [0, 0], sizes = [8, 64], strides = [1, 1]} : vector<10x64xf32> to vector<8x64xf32>
    %c4_i32 = arith.constant 4 : i32
    %20 = tpu.dynamic_rotate %19 by %c4_i32 dim 1 : vector<8x64xf32>, i32 -> vector<8x64xf32>
    %21 = vector.extract_strided_slice %17 {offsets = [0, 0, 0], sizes = [1, 1, 64], strides = [1, 1, 1]} : vector<3x3x64xf32> to vector<1x1x64xf32>
    %22 = vector.shape_cast %21 : vector<1x1x64xf32> to vector<64xf32>
    %23 = vector.shape_cast %22 : vector<64xf32> to vector<1x64xf32>
    %24 = vector.broadcast %23 : vector<1x64xf32> to vector<8x64xf32>
    %25 = arith.mulf %20, %24 : vector<8x64xf32>
    %26 = arith.addf %18, %25 : vector<8x64xf32>
    %27 = vector.extract_strided_slice %17 {offsets = [0, 1, 0], sizes = [1, 1, 64], strides = [1, 1, 1]} : vector<3x3x64xf32> to vector<1x1x64xf32>
    %28 = vector.shape_cast %27 : vector<1x1x64xf32> to vector<64xf32>
    %29 = vector.shape_cast %28 : vector<64xf32> to vector<1x64xf32>
    %30 = vector.broadcast %29 : vector<1x64xf32> to vector<8x64xf32>
    %31 = arith.mulf %19, %30 : vector<8x64xf32>
    %32 = arith.addf %26, %31 : vector<8x64xf32>
    %c60_i32 = arith.constant 60 : i32
    %33 = tpu.dynamic_rotate %19 by %c60_i32 dim 1 : vector<8x64xf32>, i32 -> vector<8x64xf32>
    %34 = vector.extract_strided_slice %17 {offsets = [0, 2, 0], sizes = [1, 1, 64], strides = [1, 1, 1]} : vector<3x3x64xf32> to vector<1x1x64xf32>
    %35 = vector.shape_cast %34 : vector<1x1x64xf32> to vector<64xf32>
    %36 = vector.shape_cast %35 : vector<64xf32> to vector<1x64xf32>
    %37 = vector.broadcast %36 : vector<1x64xf32> to vector<8x64xf32>
    %38 = arith.mulf %33, %37 : vector<8x64xf32>
    %39 = arith.addf %32, %38 : vector<8x64xf32>
    %40 = vector.extract_strided_slice %16 {offsets = [1, 0], sizes = [8, 64], strides = [1, 1]} : vector<10x64xf32> to vector<8x64xf32>
    %c4_i32_10 = arith.constant 4 : i32
    %41 = tpu.dynamic_rotate %40 by %c4_i32_10 dim 1 : vector<8x64xf32>, i32 -> vector<8x64xf32>
    %42 = vector.extract_strided_slice %17 {offsets = [1, 0, 0], sizes = [1, 1, 64], strides = [1, 1, 1]} : vector<3x3x64xf32> to vector<1x1x64xf32>
    %43 = vector.shape_cast %42 : vector<1x1x64xf32> to vector<64xf32>
    %44 = vector.shape_cast %43 : vector<64xf32> to vector<1x64xf32>
    %45 = vector.broadcast %44 : vector<1x64xf32> to vector<8x64xf32>
    %46 = arith.mulf %41, %45 : vector<8x64xf32>
    %47 = arith.addf %39, %46 : vector<8x64xf32>
    %48 = vector.extract_strided_slice %17 {offsets = [1, 1, 0], sizes = [1, 1, 64], strides = [1, 1, 1]} : vector<3x3x64xf32> to vector<1x1x64xf32>
    %49 = vector.shape_cast %48 : vector<1x1x64xf32> to vector<64xf32>
    %50 = vector.shape_cast %49 : vector<64xf32> to vector<1x64xf32>
    %51 = vector.broadcast %50 : vector<1x64xf32> to vector<8x64xf32>
    %52 = arith.mulf %40, %51 : vector<8x64xf32>
    %53 = arith.addf %47, %52 : vector<8x64xf32>
    %c60_i32_11 = arith.constant 60 : i32
    %54 = tpu.dynamic_rotate %40 by %c60_i32_11 dim 1 : vector<8x64xf32>, i32 -> vector<8x64xf32>
    %55 = vector.extract_strided_slice %17 {offsets = [1, 2, 0], sizes = [1, 1, 64], strides = [1, 1, 1]} : vector<3x3x64xf32> to vector<1x1x64xf32>
    %56 = vector.shape_cast %55 : vector<1x1x64xf32> to vector<64xf32>
    %57 = vector.shape_cast %56 : vector<64xf32> to vector<1x64xf32>
    %58 = vector.broadcast %57 : vector<1x64xf32> to vector<8x64xf32>
    %59 = arith.mulf %54, %58 : vector<8x64xf32>
    %60 = arith.addf %53, %59 : vector<8x64xf32>
    %61 = vector.extract_strided_slice %16 {offsets = [2, 0], sizes = [8, 64], strides = [1, 1]} : vector<10x64xf32> to vector<8x64xf32>
    %c4_i32_12 = arith.constant 4 : i32
    %62 = tpu.dynamic_rotate %61 by %c4_i32_12 dim 1 : vector<8x64xf32>, i32 -> vector<8x64xf32>
    %63 = vector.extract_strided_slice %17 {offsets = [2, 0, 0], sizes = [1, 1, 64], strides = [1, 1, 1]} : vector<3x3x64xf32> to vector<1x1x64xf32>
    %64 = vector.shape_cast %63 : vector<1x1x64xf32> to vector<64xf32>
    %65 = vector.shape_cast %64 : vector<64xf32> to vector<1x64xf32>
    %66 = vector.broadcast %65 : vector<1x64xf32> to vector<8x64xf32>
    %67 = arith.mulf %62, %66 : vector<8x64xf32>
    %68 = arith.addf %60, %67 : vector<8x64xf32>
    %69 = vector.extract_strided_slice %17 {offsets = [2, 1, 0], sizes = [1, 1, 64], strides = [1, 1, 1]} : vector<3x3x64xf32> to vector<1x1x64xf32>
    %70 = vector.shape_cast %69 : vector<1x1x64xf32> to vector<64xf32>
    %71 = vector.shape_cast %70 : vector<64xf32> to vector<1x64xf32>
    %72 = vector.broadcast %71 : vector<1x64xf32> to vector<8x64xf32>
    %73 = arith.mulf %61, %72 : vector<8x64xf32>
    %74 = arith.addf %68, %73 : vector<8x64xf32>
    %c60_i32_13 = arith.constant 60 : i32
    %75 = tpu.dynamic_rotate %61 by %c60_i32_13 dim 1 : vector<8x64xf32>, i32 -> vector<8x64xf32>
    %76 = vector.extract_strided_slice %17 {offsets = [2, 2, 0], sizes = [1, 1, 64], strides = [1, 1, 1]} : vector<3x3x64xf32> to vector<1x1x64xf32>
    %77 = vector.shape_cast %76 : vector<1x1x64xf32> to vector<64xf32>
    %78 = vector.shape_cast %77 : vector<64xf32> to vector<1x64xf32>
    %79 = vector.broadcast %78 : vector<1x64xf32> to vector<8x64xf32>
    %80 = arith.mulf %75, %79 : vector<8x64xf32>
    %81 = arith.addf %74, %80 : vector<8x64xf32>
    %c0_14 = arith.constant 0 : index
    %c0_15 = arith.constant 0 : index
    %82 = vector.load %arg6[%c0_14, %c0_15] : memref<1x64xf32, #tpu.memory_space<vmem>>, vector<1x64xf32>
    %83 = vector.broadcast %82 : vector<1x64xf32> to vector<8x64xf32>
    %84 = arith.addf %81, %83 : vector<8x64xf32>
    %cst_16 = arith.constant 0.000000e+00 : f32
    %85 = vector.broadcast %cst_16 : f32 to vector<8x64xf32>
    %86 = arith.maximumf %84, %85 : vector<8x64xf32>
    %c0_17 = arith.constant 0 : index
    %c0_18 = arith.constant 0 : index
    %87 = vector.load %arg7[%c0_17, %c0_18] : memref<64x128xf32, #tpu.memory_space<vmem>>, vector<64x128xf32>
    %cst_19 = arith.constant dense<0.000000e+00> : vector<8x128xf32>
    %88 = tpu.matmul %86, %87, %cst_19 {dimension_numbers = #tpu.dot_dimension_numbers<[1], [0], [0], [1], [0, 0, 1, 1], [], []>} : vector<8x64xf32>, vector<64x128xf32>, vector<8x128xf32> -> vector<8x128xf32>
    %c0_20 = arith.constant 0 : index
    %c0_21 = arith.constant 0 : index
    %89 = vector.load %arg8[%c0_20, %c0_21] : memref<1x128xf32, #tpu.memory_space<vmem>>, vector<1x128xf32>
    %90 = vector.broadcast %89 : vector<1x128xf32> to vector<8x128xf32>
    %91 = arith.addf %88, %90 : vector<8x128xf32>
    %cst_22 = arith.constant 0.000000e+00 : f32
    %92 = vector.broadcast %cst_22 : f32 to vector<8x128xf32>
    %93 = arith.maximumf %91, %92 : vector<8x128xf32>
    %c0_23 = arith.constant 0 : index
    %c0_24 = arith.constant 0 : index
    %c0_25 = arith.constant 0 : index
    %94 = vector.load %arg9[%c0_23, %c0_24, %c0_25] : memref<1x8x128xf32, #tpu.memory_space<vmem>>, vector<1x8x128xf32>
    %95 = vector.shape_cast %94 : vector<1x8x128xf32> to vector<8x128xf32>
    %96 = vector.shape_cast %93 : vector<8x128xf32> to vector<1x8x128xf32>
    tpu.vector_store %arg9[%c0_23, %c0_24, %c0_25], %96 {strides = array<i32>} : memref<1x8x128xf32, #tpu.memory_space<vmem>>, vector<1x8x128xf32>,
    return
  }
  func.func @transform_0(%arg0: i32, %arg1: i32) -> (i32, i32, i32) {
    %c0_i32 = arith.constant 0 : i32
    %c0_i32_0 = arith.constant 0 : i32
    return %arg0, %arg1, %c0_i32 : i32, i32, i32
  }
  func.func @transform_1(%arg0: i32, %arg1: i32) -> (i32, i32, i32) {
    %c1_i32 = arith.constant 1 : i32
    %0 = arith.muli %arg1, %c1_i32 : i32
    %c1_i32_0 = arith.constant 1 : i32
    %1 = arith.subi %0, %c1_i32_0 : i32
    %c0_i32 = arith.constant 0 : i32
    %2 = arith.maxsi %1, %c0_i32 : i32
    %c0_i32_1 = arith.constant 0 : i32
    %c0_i32_2 = arith.constant 0 : i32
    return %arg0, %2, %c0_i32_1 : i32, i32, i32
  }
  func.func @transform_2(%arg0: i32, %arg1: i32) -> (i32, i32, i32) {
    %c1_i32 = arith.constant 1 : i32
    %0 = arith.addi %arg1, %c1_i32 : i32
    %c1_i32_0 = arith.constant 1 : i32
    %1 = arith.muli %0, %c1_i32_0 : i32
    %c1_i32_1 = arith.constant 1 : i32
    %2 = arith.minsi %1, %c1_i32_1 : i32
    %c0_i32 = arith.constant 0 : i32
    %c0_i32_2 = arith.constant 0 : i32
    return %arg0, %2, %c0_i32 : i32, i32, i32
  }
  func.func @transform_3(%arg0: i32, %arg1: i32) -> (i32, i32, i32) {
    %c0_i32 = arith.constant 0 : i32
    %c0_i32_0 = arith.constant 0 : i32
    %c0_i32_1 = arith.constant 0 : i32
    %c0_i32_2 = arith.constant 0 : i32
    return %c0_i32, %c0_i32_0, %c0_i32_1 : i32, i32, i32
  }
  func.func @transform_4(%arg0: i32, %arg1: i32) -> (i32, i32) {
    %c0_i32 = arith.constant 0 : i32
    %c0_i32_0 = arith.constant 0 : i32
    %c0_i32_1 = arith.constant 0 : i32
    return %c0_i32, %c0_i32_0 : i32, i32
  }
  func.func @transform_5(%arg0: i32, %arg1: i32) -> (i32, i32) {
    %c0_i32 = arith.constant 0 : i32
    %c0_i32_0 = arith.constant 0 : i32
    %c0_i32_1 = arith.constant 0 : i32
    return %c0_i32, %c0_i32_0 : i32, i32
  }
  func.func @transform_6(%arg0: i32, %arg1: i32) -> (i32, i32) {
    %c0_i32 = arith.constant 0 : i32
    %c0_i32_0 = arith.constant 0 : i32
    %c0_i32_1 = arith.constant 0 : i32
    return %c0_i32, %c0_i32_0 : i32, i32
  }
  func.func @transform_7(%arg0: i32, %arg1: i32) -> (i32, i32, i32) {
    %c0_i32 = arith.constant 0 : i32
    %c0_i32_0 = arith.constant 0 : i32
    return %arg0, %arg1, %c0_i32 : i32, i32, i32
  }
}

</mosaic_0001>

<llo_original>
// kernel: tpu_custom_call.1
$region0: #{tpu_custom_call.1}
  #allocation0 [shape = 'u32[]', space=smem, size = 0x4, offset = 0x4, fixed_abs, tag = 'smem constant byte address 0x4 - core index']
  #allocation1 [shape = 'u32[144,128]{1,0:T(1,128)}', space=vmem, size = 0x12000, scoped, tag = 'internal scratch']
  %s0 = inlined_call_operand.hbm [shape: f32[2,16,64], index: 0, kind: input, shape index: {}]
  %s1 = inlined_call_operand.hbm [shape: f32[2,16,64], index: 1, kind: input, shape index: {}]
  %s2 = inlined_call_operand.hbm [shape: f32[2,16,64], index: 2, kind: input, shape index: {}]
  %s3 = inlined_call_operand.hbm [shape: f32[3,3,64], index: 3, kind: input, shape index: {}]
  %s4 = inlined_call_operand.vmem [shape: f32[1,64], index: 4, kind: input, shape index: {}]
  %s5 = inlined_call_operand.hbm [shape: f32[64,128], index: 5, kind: input, shape index: {}]
  %s6 = inlined_call_operand.vmem [shape: f32[1,128], index: 6, kind: input, shape index: {}]
  %s7 = inlined_call_operand.hbm [shape: f32[2,16,128], index: 7, kind: output, shape index: {}]
  %s8 = sld [smem:[#allocation0]]
  $region81: #{tpu_custom_call.1} parent=0
    _
  %s10 = ssub.s32 1, %s8
  %s11 = scalar_select 0, %s10, %s8
  $region1: #{tpu_custom_call.1} parent=0
    #allocation2 [shape = 'u8[8192]{0}', space=vmem, size = 0x2000, scoped, tag = 'input window, operand 0']
    #allocation3 [shape = 's32[2]{0}', space=sflag, size = 0x8, scoped, tag = 'scoped memory for tpu_custom_call.1']
    #allocation4 [shape = 's32[2]{0}', space=sflag, size = 0x8, scoped, tag = 'scoped memory for tpu_custom_call.1']
    #allocation5 [shape = 'u8[8192]{0}', space=vmem, size = 0x2000, scoped, tag = 'input window, operand 1']
    #allocation6 [shape = 's32[2]{0}', space=sflag, size = 0x8, scoped, tag = 'scoped memory for tpu_custom_call.1']
    #allocation7 [shape = 'u8[8192]{0}', space=vmem, size = 0x2000, scoped, tag = 'input window, operand 2']
    #allocation8 [shape = 'u8[6144]{0}', space=vmem, size = 0x1800, scoped, tag = 'input window, operand 3, single buffered']
    #allocation9 [shape = 's32[1]{0}', space=sflag, size = 0x4, scoped, tag = 'scoped memory for tpu_custom_call.1']
    #allocation10 [shape = 'u8[32768]{0}', space=vmem, size = 0x8000, scoped, tag = 'input window, operand 5, single buffered']
    #allocation11 [shape = 'u8[8192]{0}', space=vmem, size = 0x2000, scoped, tag = 'output window, operand 0']
    %12 = vsyncpa [#allocation3], 0
    %s13 = scalar_lea.sflag [#allocation3], 1
    %14 = vsyncpa %s13, 0
    %15 = vsyncpa [#allocation6], 0
    %s16 = scalar_lea.sflag [#allocation6], 1
    %17 = vsyncpa %s16, 0
    %18 = vsyncpa [#allocation9], 0
    %19 = vsyncpa [#allocation4], 0
    %s20 = scalar_lea.sflag [#allocation4], 1
    %21 = vsyncpa %s20, 0
    loop: start=0, step=1, limit=6
    $region2: #{tpu_custom_call.1} parent=1 // loop_pre_header
      _
    $region3: #{tpu_custom_call.1} parent=1 // loop_header
      %s23 = sphi 0, %s27
      %p24 = scmp.ge.s32.totalorder %s23, 6
      %s30 = sphi 0, %s42
      %s31 = sphi 0, %s38
      %s32 = sphi 0, %s30
      %s33 = sphi 0, %s31
      %s34 = sphi 0, %s32
      %s35 = sphi 0, %s33
      %s47 = sphi 0, %s49
      %s50 = sphi 0, %s47
      %s51 = sphi 0, %s50
      %s67 = sphi 0, %s51
      %s81 = sphi 0, %s83
      %s84 = sphi 0, %s81
      %s85 = sphi 0, %s84
      %s101 = sphi 0, %s85
      %s115 = sphi 0, %s117
      %s118 = sphi 0, %s115
      %s119 = sphi 0, %s118
      %s135 = sphi 0, %s119
      %s139 = sphi 0, %s139
      %s141 = sphi 0, %s139
      %s142 = sphi 0, %s141
      %s156 = sphi 0, %s142
      %s160 = sphi 0, %s160
      %s162 = sphi 0, %s160
      %s163 = sphi 0, %s162
      %s177 = sphi 0, %s163
      %s181 = sphi 0, %s181
      %s183 = sphi 0, %s181
      %s184 = sphi 0, %s183
      %s198 = sphi 0, %s184
      %s202 = sphi 0, %s202
      %s204 = sphi 0, %s202
      %s205 = sphi 0, %s204
      %s219 = sphi 0, %s205
      %s227 = sphi 0, %s229
      %s230 = sphi 0, %s227
      %s231 = sphi 0, %s230
      %s247 = sphi 0, %s231
    $region4: #{tpu_custom_call.1} parent=1 // loop_header_branch
      %26 = sbr.rel (%p24) target = $region8
    $region5: #{tpu_custom_call.1} parent=1 // loop_body
      %s28 = ssub.s32 %s23, 1
      %s29 = ssub.s32 %s23, 2
      %s36 = sadd.s32 1, %s31
      %p37 = scmp.ge.s32.totalorder %s36, 2
      %s38 = scalar_select %p37, 0, %s36
      %s39 = sadd.s32 1, %s30
      %s40 = scalar_select %p37, %s39, %s30
      %p41 = scmp.ge.s32.totalorder %s40, 2
      %s42 = scalar_select %p41, 0, %s40
      %s43 = ssub.s32 %s30, %s42
      %s44 = ssub.s32 %s31, %s38
      %s45 = sor.u32 %s43, %s44
      %p46 = scmp.eq.s32.totalorder %s45, 0
      %s48 = sadd.s32 %s47, 1
      %s49 = scalar_select %p46, %s47, %s48
      %p52 = pneg %p46
      %p53 = scmp.eq.s32.totalorder %s23, 3
      %p54 = por %p52, %p53
      %p55 = scmp.ne.s32.totalorder %s47, %s50
      %p56 = scmp.eq.s32.totalorder %s23, 0
      %p57 = por %p55, %p56
      %p58 = scmp.ne.s32.totalorder %s47, %s50
      %p59 = scmp.eq.s32.totalorder %s28, 3
      %p60 = por %p58, %p59
      %p61 = scmp.ne.s32.totalorder %s50, %s51
      %p62 = scmp.eq.s32.totalorder %s28, 0
      %p63 = por %p61, %p62
      %p64 = scmp.ne.s32.totalorder %s50, %s51
      %p65 = scmp.eq.s32.totalorder %s29, 3
      %p66 = por %p64, %p65
      %p68 = scmp.ne.s32.totalorder %s51, %s67
      %p69 = scmp.eq.s32.totalorder %s29, 0
      %p70 = por %p68, %p69
      %s71 = ssub.s32 %s31, 1
      %p72 = scmp.gt.s32.totalorder %s71, 0
      %s73 = scalar_select %p72, %s71, 0
      %s74 = ssub.s32 %s38, 1
      %p75 = scmp.gt.s32.totalorder %s74, 0
      %s76 = scalar_select %p75, %s74, 0
      %s77 = ssub.s32 %s30, %s42
      %s78 = ssub.s32 %s73, %s76
      %s79 = sor.u32 %s77, %s78
      %p80 = scmp.eq.s32.totalorder %s79, 0
      %s82 = sadd.s32 %s81, 1
      %s83 = scalar_select %p80, %s81, %s82
      %p86 = pneg %p80
      %p87 = scmp.eq.s32.totalorder %s23, 3
      %p88 = por %p86, %p87
      %p89 = scmp.ne.s32.totalorder %s81, %s84
      %p90 = scmp.eq.s32.totalorder %s23, 0
      %p91 = por %p89, %p90
      %p92 = scmp.ne.s32.totalorder %s81, %s84
      %p93 = scmp.eq.s32.totalorder %s28, 3
      %p94 = por %p92, %p93
      %p95 = scmp.ne.s32.totalorder %s84, %s85
      %p96 = scmp.eq.s32.totalorder %s28, 0
      %p97 = por %p95, %p96
      %p98 = scmp.ne.s32.totalorder %s84, %s85
      %p99 = scmp.eq.s32.totalorder %s29, 3
      %p100 = por %p98, %p99
      %p102 = scmp.ne.s32.totalorder %s85, %s101
      %p103 = scmp.eq.s32.totalorder %s29, 0
      %p104 = por %p102, %p103
      %s105 = sadd.s32 %s31, 1
      %p106 = scmp.lt.s32.totalorder %s105, 1
      %s107 = scalar_select %p106, %s105, 1
      %s108 = sadd.s32 %s38, 1
      %p109 = scmp.lt.s32.totalorder %s108, 1
      %s110 = scalar_select %p109, %s108, 1
      %s111 = ssub.s32 %s30, %s42
      %s112 = ssub.s32 %s107, %s110
      %s113 = sor.u32 %s111, %s112
      %p114 = scmp.eq.s32.totalorder %s113, 0
      %s116 = sadd.s32 %s115, 1
      %s117 = scalar_select %p114, %s115, %s116
      %p120 = pneg %p114
      %p121 = scmp.eq.s32.totalorder %s23, 3
      %p122 = por %p120, %p121
      %p123 = scmp.ne.s32.totalorder %s115, %s118
      %p124 = scmp.eq.s32.totalorder %s23, 0
      %p125 = por %p123, %p124
      %p126 = scmp.ne.s32.totalorder %s115, %s118
      %p127 = scmp.eq.s32.totalorder %s28, 3
      %p128 = por %p126, %p127
      %p129 = scmp.ne.s32.totalorder %s118, %s119
      %p130 = scmp.eq.s32.totalorder %s28, 0
      %p131 = por %p129, %p130
      %p132 = scmp.ne.s32.totalorder %s118, %s119
      %p133 = scmp.eq.s32.totalorder %s29, 3
      %p134 = por %p132, %p133
      %p136 = scmp.ne.s32.totalorder %s119, %s135
      %p137 = scmp.eq.s32.totalorder %s29, 0
      %p138 = por %p136, %p137
      %s140 = sadd.s32 %s139, 1
      %p143 = scmp.eq.s32.totalorder %s23, 3
      %p144 = scmp.ne.s32.totalorder %s139, %s141
      %p145 = scmp.eq.s32.totalorder %s23, 0
      %p146 = por %p144, %p145
      %p147 = scmp.ne.s32.totalorder %s139, %s141
      %p148 = scmp.eq.s32.totalorder %s28, 3
      %p149 = por %p147, %p148
      %p150 = scmp.ne.s32.totalorder %s141, %s142
      %p151 = scmp.eq.s32.totalorder %s28, 0
      %p152 = por %p150, %p151
      %p153 = scmp.ne.s32.totalorder %s141, %s142
      %p154 = scmp.eq.s32.totalorder %s29, 3
      %p155 = por %p153, %p154
      %p157 = scmp.ne.s32.totalorder %s142, %s156
      %p158 = scmp.eq.s32.totalorder %s29, 0
      %p159 = por %p157, %p158
      %s161 = sadd.s32 %s160, 1
      %p164 = scmp.eq.s32.totalorder %s23, 3
      %p165 = scmp.ne.s32.totalorder %s160, %s162
      %p166 = scmp.eq.s32.totalorder %s23, 0
      %p167 = por %p165, %p166
      %p168 = scmp.ne.s32.totalorder %s160, %s162
      %p169 = scmp.eq.s32.totalorder %s28, 3
      %p170 = por %p168, %p169
      %p171 = scmp.ne.s32.totalorder %s162, %s163
      %p172 = scmp.eq.s32.totalorder %s28, 0
      %p173 = por %p171, %p172
      %p174 = scmp.ne.s32.totalorder %s162, %s163
      %p175 = scmp.eq.s32.totalorder %s29, 3
      %p176 = por %p174, %p175
      %p178 = scmp.ne.s32.totalorder %s163, %s177
      %p179 = scmp.eq.s32.totalorder %s29, 0
      %p180 = por %p178, %p179
      %s182 = sadd.s32 %s181, 1
      %p185 = scmp.eq.s32.totalorder %s23, 3
      %p186 = scmp.ne.s32.totalorder %s181, %s183
      %p187 = scmp.eq.s32.totalorder %s23, 0
      %p188 = por %p186, %p187
      %p189 = scmp.ne.s32.totalorder %s181, %s183
      %p190 = scmp.eq.s32.totalorder %s28, 3
      %p191 = por %p189, %p190
      %p192 = scmp.ne.s32.totalorder %s183, %s184
      %p193 = scmp.eq.s32.totalorder %s28, 0
      %p194 = por %p192, %p193
      %p195 = scmp.ne.s32.totalorder %s183, %s184
      %p196 = scmp.eq.s32.totalorder %s29, 3
      %p197 = por %p195, %p196
      %p199 = scmp.ne.s32.totalorder %s184, %s198
      %p200 = scmp.eq.s32.totalorder %s29, 0
      %p201 = por %p199, %p200
      %s203 = sadd.s32 %s202, 1
      %p206 = scmp.eq.s32.totalorder %s23, 3
      %p207 = scmp.ne.s32.totalorder %s202, %s204
      %p208 = scmp.eq.s32.totalorder %s23, 0
      %p209 = por %p207, %p208
      %p210 = scmp.ne.s32.totalorder %s202, %s204
      %p211 = scmp.eq.s32.totalorder %s28, 3
      %p212 = por %p210, %p211
      %p213 = scmp.ne.s32.totalorder %s204, %s205
      %p214 = scmp.eq.s32.totalorder %s28, 0
      %p215 = por %p213, %p214
      %p216 = scmp.ne.s32.totalorder %s204, %s205
      %p217 = scmp.eq.s32.totalorder %s29, 3
      %p218 = por %p216, %p217
      %p220 = scmp.ne.s32.totalorder %s205, %s219
      %p221 = scmp.eq.s32.totalorder %s29, 0
      %p222 = por %p220, %p221
      %s223 = ssub.s32 %s30, %s42
      %s224 = ssub.s32 %s31, %s38
      %s225 = sor.u32 %s223, %s224
      %p226 = scmp.eq.s32.totalorder %s225, 0
      %s228 = sadd.s32 %s227, 1
      %s229 = scalar_select %p226, %s227, %s228
      %p232 = pneg %p226
      %p233 = scmp.eq.s32.totalorder %s23, 3
      %p234 = por %p232, %p233
      %p235 = scmp.ne.s32.totalorder %s227, %s230
      %p236 = scmp.eq.s32.totalorder %s23, 0
      %p237 = por %p235, %p236
      %p238 = scmp.ne.s32.totalorder %s227, %s230
      %p239 = scmp.eq.s32.totalorder %s28, 3
      %p240 = por %p238, %p239
      %p241 = scmp.ne.s32.totalorder %s230, %s231
      %p242 = scmp.eq.s32.totalorder %s28, 0
      %p243 = por %p241, %p242
      %p244 = scmp.ne.s32.totalorder %s230, %s231
      %p245 = scmp.eq.s32.totalorder %s29, 3
      %p246 = por %p244, %p245
      %p248 = scmp.ne.s32.totalorder %s231, %s247
      %p249 = scmp.eq.s32.totalorder %s29, 0
      %p250 = por %p248, %p249
      %p251 = scmp.le.s32.totalorder 1, %s23
      %p252 = scmp.lt.s32.totalorder %s23, 5
      %p253 = pnand %p251, %p252
      %p254 = pneg %p253
      // Predicated region
      $region9: #{tpu_custom_call.1} parent=5 // pred_check
        _
      $region10: #{tpu_custom_call.1} parent=5 // pred_check_branch
        %256 = sbr.rel (%p253) target = $region12
      $region11: #{tpu_custom_call.1} parent=5 // pred_region
        %s257 = ssub.s32 %s23, 1
        // Predicated region
        $region13: #{tpu_custom_call.1} parent=11 // pred_check
          %p258 = pneg %p152
        $region14: #{tpu_custom_call.1} parent=11 // pred_check_branch
          %260 = sbr.rel (%p258) target = $region16
        $region15: #{tpu_custom_call.1} parent=11 // pred_region
          %s262 = ssub.s32 192, 192
          %263 = vsyncadd [#allocation9], %s262
          %s264 = sshll.u32 [#allocation8], 4
          %s265 = int_to_ptr.vmem [resolvable:$true] %s264
          %270 = dma.hbm_to_vmem [thread:$0]  %s3, 192, %s265, [#allocation9], 64, 64, 4
        $region16: #{tpu_custom_call.1} parent=11 // pred_fallthru
          _
        // Predicated region
        $region17: #{tpu_custom_call.1} parent=11 // pred_check
          %p271 = pneg %p173
        $region18: #{tpu_custom_call.1} parent=11 // pred_check_branch
          %273 = sbr.rel (%p271) target = $region20
        $region19: #{tpu_custom_call.1} parent=11 // pred_region
          _
        $region20: #{tpu_custom_call.1} parent=11 // pred_fallthru
          _
        // Predicated region
        $region21: #{tpu_custom_call.1} parent=11 // pred_check
          %p274 = pneg %p194
        $region22: #{tpu_custom_call.1} parent=11 // pred_check_branch
          %276 = sbr.rel (%p274) target = $region24
        $region23: #{tpu_custom_call.1} parent=11 // pred_region
          %s278 = ssub.s32 1024, 1024
          %279 = vsyncadd [#allocation9], %s278
          %s280 = sshll.u32 [#allocation10], 4
          %s281 = int_to_ptr.vmem [resolvable:$true] %s280
          %286 = dma.hbm_to_vmem [thread:$0]  %s5, 1024, %s281, [#allocation9], 128, 128, 8
        $region24: #{tpu_custom_call.1} parent=11 // pred_fallthru
          _
        // Predicated region
        $region25: #{tpu_custom_call.1} parent=11 // pred_check
          %p287 = pneg %p215
        $region26: #{tpu_custom_call.1} parent=11 // pred_check_branch
          %289 = sbr.rel (%p287) target = $region28
        $region27: #{tpu_custom_call.1} parent=11 // pred_region
          _
        $region28: #{tpu_custom_call.1} parent=11 // pred_fallthru
          _
      $region12: #{tpu_custom_call.1} parent=5 // pred_fallthru
        _
      %p290 = scmp.lt.s32.totalorder %s23, 4
      // Predicated region
      $region29: #{tpu_custom_call.1} parent=5 // pred_check
        %p291 = pneg %p290
      $region30: #{tpu_custom_call.1} parent=5 // pred_check_branch
        %293 = sbr.rel (%p291) target = $region32
      $region31: #{tpu_custom_call.1} parent=5 // pred_region
        // Predicated region
        $region33: #{tpu_custom_call.1} parent=31 // pred_check
          %p294 = pneg %p57
        $region34: #{tpu_custom_call.1} parent=31 // pred_check_branch
          %296 = sbr.rel (%p294) target = $region36
        $region35: #{tpu_custom_call.1} parent=31 // pred_region
          %s297 = sand.u32 %s47, 1
          %s298 = scalar_lea.sflag [#allocation3], %s297
          %s299 = sand.u32 %s47, 1
          %s300 = smul.addr %s299, 8
          %s301 = scalar_lea.vmem [#allocation2], %s300
          %s303 = ssub.s32 128, 128
          %304 = vsyncadd %s298, %s303
          %s305 = smul.addr %s30, 2
          %s306 = sadd.s32 %s31, %s305
          %s307 = smul.addr %s306, 128
          %s308 = scalar_lea.hbm %s0, %s307
          %s310 = sshll.u32 %s301, 4
          %s311 = int_to_ptr.vmem [resolvable:$true] %s310
          %313 = dma.hbm_to_vmem [thread:$0]  %s308, 128, %s311, %s298
        $region36: #{tpu_custom_call.1} parent=31 // pred_fallthru
          _
        // Predicated region
        $region37: #{tpu_custom_call.1} parent=31 // pred_check
          %p314 = pneg %p91
        $region38: #{tpu_custom_call.1} parent=31 // pred_check_branch
          %316 = sbr.rel (%p314) target = $region40
        $region39: #{tpu_custom_call.1} parent=31 // pred_region
          %s317 = sand.u32 %s23, 1
          %s318 = scalar_lea.sflag [#allocation6], %s317
          %s319 = sand.u32 %s81, 1
          %s320 = smul.addr %s319, 8
          %s321 = scalar_lea.vmem [#allocation5], %s320
          %s322 = ssub.s32 %s31, 1
          %p323 = scmp.gt.s32.totalorder %s322, 0
          %s324 = scalar_select %p323, %s322, 0
          %s326 = ssub.s32 128, 128
          %327 = vsyncadd %s318, %s326
          %s328 = smul.addr %s30, 2
          %s329 = sadd.s32 %s324, %s328
          %s330 = smul.addr %s329, 128
          %s331 = scalar_lea.hbm %s1, %s330
          %s333 = sshll.u32 %s321, 4
          %s334 = int_to_ptr.vmem [resolvable:$true] %s333
          %336 = dma.hbm_to_vmem [thread:$0]  %s331, 128, %s334, %s318
        $region40: #{tpu_custom_call.1} parent=31 // pred_fallthru
          _
        // Predicated region
        $region41: #{tpu_custom_call.1} parent=31 // pred_check
          %p337 = pneg %p125
        $region42: #{tpu_custom_call.1} parent=31 // pred_check_branch
          %339 = sbr.rel (%p337) target = $region44
        $region43: #{tpu_custom_call.1} parent=31 // pred_region
          %s340 = sand.u32 %s23, 1
          %s341 = scalar_lea.sflag [#allocation6], %s340
          %s342 = sand.u32 %s115, 1
          %s343 = smul.addr %s342, 8
          %s344 = scalar_lea.vmem [#allocation7], %s343
          %s345 = sadd.s32 %s31, 1
          %p346 = scmp.lt.s32.totalorder %s345, 1
          %s347 = scalar_select %p346, %s345, 1
          %s349 = ssub.s32 128, 128
          %350 = vsyncadd %s341, %s349
          %s351 = smul.addr %s30, 2
          %s352 = sadd.s32 %s347, %s351
          %s353 = smul.addr %s352, 128
          %s354 = scalar_lea.hbm %s2, %s353
          %s356 = sshll.u32 %s344, 4
          %s357 = int_to_ptr.vmem [resolvable:$true] %s356
          %359 = dma.hbm_to_vmem [thread:$0]  %s354, 128, %s357, %s341
        $region44: #{tpu_custom_call.1} parent=31 // pred_fallthru
          _
      $region32: #{tpu_custom_call.1} parent=5 // pred_fallthru
        _
      %p360 = scmp.le.s32.totalorder 1, %s23
      %p361 = scmp.lt.s32.totalorder %s23, 5
      %p362 = pnand %p360, %p361
      %p363 = pneg %p362
      // Predicated region
      $region45: #{tpu_custom_call.1} parent=5 // pred_check
        _
      $region46: #{tpu_custom_call.1} parent=5 // pred_check_branch
        %365 = sbr.rel (%p362) target = $region48
      $region47: #{tpu_custom_call.1} parent=5 // pred_region
        %s366 = ssub.s32 %s23, 1
        %s367 = sand.u32 %s50, 1
        %s368 = scalar_lea.sflag [#allocation3], %s367
        %s369 = sand.u32 %s50, 1
        %s370 = smul.addr %s369, 8
        %s371 = scalar_lea.vmem [#allocation2], %s370
        // Predicated region
        $region49: #{tpu_custom_call.1} parent=47 // pred_check
          %p372 = pneg %p63
        $region50: #{tpu_custom_call.1} parent=47 // pred_check_branch
          %374 = sbr.rel (%p372) target = $region52
        $region51: #{tpu_custom_call.1} parent=47 // pred_region
          %375 = dma.done %s368, 128
        $region52: #{tpu_custom_call.1} parent=47 // pred_fallthru
          _
        %s376 = sand.u32 %s28, 1
        %s377 = scalar_lea.sflag [#allocation6], %s376
        %s378 = sand.u32 %s84, 1
        %s379 = smul.addr %s378, 8
        %s380 = scalar_lea.vmem [#allocation5], %s379
        // Predicated region
        $region53: #{tpu_custom_call.1} parent=47 // pred_check
          %p381 = pneg %p97
        $region54: #{tpu_custom_call.1} parent=47 // pred_check_branch
          %383 = sbr.rel (%p381) target = $region56
        $region55: #{tpu_custom_call.1} parent=47 // pred_region
          %384 = dma.done %s377, 128
        $region56: #{tpu_custom_call.1} parent=47 // pred_fallthru
          _
        %s385 = sand.u32 %s28, 1
        %s386 = scalar_lea.sflag [#allocation6], %s385
        %s387 = sand.u32 %s118, 1
        %s388 = smul.addr %s387, 8
        %s389 = scalar_lea.vmem [#allocation7], %s388
        // Predicated region
        $region57: #{tpu_custom_call.1} parent=47 // pred_check
          %p390 = pneg %p131
        $region58: #{tpu_custom_call.1} parent=47 // pred_check_branch
          %392 = sbr.rel (%p390) target = $region60
        $region59: #{tpu_custom_call.1} parent=47 // pred_region
          %393 = dma.done %s386, 128
        $region60: #{tpu_custom_call.1} parent=47 // pred_fallthru
          _
        // Predicated region
        $region61: #{tpu_custom_call.1} parent=47 // pred_check
          %p394 = pneg %p152
        $region62: #{tpu_custom_call.1} parent=47 // pred_check_branch
          %396 = sbr.rel (%p394) target = $region64
        $region63: #{tpu_custom_call.1} parent=47 // pred_region
          %397 = dma.done [#allocation9], 192
        $region64: #{tpu_custom_call.1} parent=47 // pred_fallthru
          _
        // Predicated region
        $region65: #{tpu_custom_call.1} parent=47 // pred_check
          %p398 = pneg %p194
        $region66: #{tpu_custom_call.1} parent=47 // pred_check_branch
          %400 = sbr.rel (%p398) target = $region68
        $region67: #{tpu_custom_call.1} parent=47 // pred_region
          %401 = dma.done [#allocation9], 1024
        $region68: #{tpu_custom_call.1} parent=47 // pred_fallthru
          _
        %s402 = sand.u32 %s50, 1
        %s403 = scalar_lea.sflag [#allocation3], %s402
        %s404 = sand.u32 %s50, 1
        %s405 = smul.addr %s404, 8
        %s406 = scalar_lea.vmem [#allocation2], %s405
        %p407 = pneg %p63
        %p408 = pneg %p60
        %s409 = sand.u32 %s28, 1
        %s410 = scalar_lea.sflag [#allocation6], %s409
        %s411 = sand.u32 %s84, 1
        %s412 = smul.addr %s411, 8
        %s413 = scalar_lea.vmem [#allocation5], %s412
        %p414 = pneg %p97
        %p415 = pneg %p94
        %s416 = sand.u32 %s28, 1
        %s417 = scalar_lea.sflag [#allocation6], %s416
        %s418 = sand.u32 %s118, 1
        %s419 = smul.addr %s418, 8
        %s420 = scalar_lea.vmem [#allocation7], %s419
        %p421 = pneg %p131
        %p422 = pneg %p128
        %p423 = pneg %p152
        %p424 = pneg %p149
        %p425 = pneg %p173
        %p426 = pneg %p170
        %p427 = pneg %p194
        %p428 = pneg %p191
        %p429 = pneg %p215
        %p430 = pneg %p212
        %p431 = pneg %p243
        %p432 = pneg %p240
        %s433 = sand.u32 %s230, 1
        %s434 = scalar_lea.sflag [#allocation4], %s433
        %s435 = sand.u32 %s230, 1
        %s436 = smul.addr %s435, 8
        %s437 = scalar_lea.vmem [#allocation11], %s436
        %s438 = ssub.s32 %s33, 1
        %p439 = scmp.gt.s32.totalorder %s438, 0
        %s440 = scalar_select %p439, %s438, 0
        %s441 = sadd.s32 %s33, 1
        %p442 = scmp.lt.s32.totalorder %s441, 1
        %s443 = scalar_select %p442, %s441, 1
        %v444 = vld [vmem:[%s371] sm:$0xff]
        %v445 = vld [vmem:[%s380 + $0x7] sm:$0x1]
        %p446 = scmp.gt.s32.totalorder %s33, 0
        %s447 = scalar_select %p446, 1, 0
        %s448 = scvt.s32.f32 %s447
        %v449 = vstv %s448
        %v450 = vmul.f32 %v445, %v449
        %v451 = vld [vmem:[%s389] sm:$0x1]
        %p452 = scmp.lt.s32.totalorder %s33, 1
        %s453 = scalar_select %p452, 1, 0
        %s454 = scvt.s32.f32 %s453
        %v455 = vstv %s454
        %v456 = vmul.f32 %v451, %v455
        %v458 = vrot.slane %v444, 7
        %v461 = vrot.slane %v456, 7
        %vm463 = vcmask 1040384
        %v464 = vsel %vm463, %v450, %v458
        %v465 = vsel %vm463, %v458, %v461
        %v466 = vld [vmem:[#allocation8] sm:$0x7]
        %v467 = vld [vmem:[#allocation8 + $0x4] sm:$0x7]
        %v468 = vld [vmem:[#allocation8 + $0x8] sm:$0x7]
        %vm469 = vcmask 1048064
        %470 = vrot.lane.b32.xlu0 %v464, 64
        %v471 = vpop.permute.xlu0 %470
        %v472 = vsel %vm469, %v471, %v464
        %473 = vrot.lane.b32.xlu0 %v472, 64
        %v474 = vpop.permute.xlu0 %473
        %v475 = vsel %vm469, %v474, %v464
        %v476 = vlaneseq
        %v477 = vshrl.u32 %v476, 7
        %v478 = vsub.s32 0, %v477
        %v479 = vrot.slane %v466, %v478
        %481 = vrot.lane.b32.xlu0 %v479, 60
        %v482 = vpop.permute.xlu0 %481
        %v484 = vmul.f32 %v475, %v482
        %v485 = vadd.f32 %v484, 0.0
        %v486 = vlaneseq
        %v487 = vshrl.u32 %v486, 7
        %v488 = vsub.s32 1, %v487
        %v489 = vrot.slane %v466, %v488
        %v490 = vmul.f32 %v464, %v489
        %492 = vrot.lane.b32.xlu0 %v490, 60
        %v493 = vpop.permute.xlu0 %492
        %v495 = vadd.f32 %v485, %v493
        %v496 = vlaneseq
        %v497 = vshrl.u32 %v496, 7
        %v498 = vsub.s32 2, %v497
        %v499 = vrot.slane %v466, %v498
        %501 = vrot.lane.b32.xlu0 %v499, 4
        %v502 = vpop.permute.xlu0 %501
        %v504 = vmul.f32 %v475, %v502
        %506 = vrot.lane.b32.xlu0 %v504, 56
        %v507 = vpop.permute.xlu0 %506
        %v509 = vadd.f32 %v495, %v507
        %vm512 = vcmask 1046528
        %v513 = vrot.slane %v464, 1
        %v514 = vrot.slane %v465, 1
        %v515 = vsel %vm512, %v513, %v514
        %517 = vrot.lane.b32.xlu0 %v515, 64
        %v518 = vpop.permute.xlu0 %517
        %v519 = vsel %vm469, %v518, %v515
        %520 = vrot.lane.b32.xlu0 %v519, 64
        %v521 = vpop.permute.xlu0 %520
        %v522 = vsel %vm469, %v521, %v515
        %v523 = vlaneseq
        %v524 = vshrl.u32 %v523, 7
        %v525 = vsub.s32 0, %v524
        %v526 = vrot.slane %v467, %v525
        %528 = vrot.lane.b32.xlu0 %v526, 60
        %v529 = vpop.permute.xlu0 %528
        %v531 = vmul.f32 %v522, %v529
        %v532 = vadd.f32 %v509, %v531
        %v533 = vlaneseq
        %v534 = vshrl.u32 %v533, 7
        %v535 = vsub.s32 1, %v534
        %v536 = vrot.slane %v467, %v535
        %v537 = vmul.f32 %v464, %v536
        %v538 = vmul.f32 %v465, %v536
        %v541 = vrot.slane %v537, 1
        %v542 = vrot.slane %v538, 1
        %v543 = vsel %vm512, %v541, %v542
        %544 = vrot.lane.b32.xlu0 %v543, 60
        %v545 = vpop.permute.xlu0 %544
        %v547 = vadd.f32 %v532, %v545
        %v548 = vlaneseq
        %v549 = vshrl.u32 %v548, 7
        %v550 = vsub.s32 2, %v549
        %v551 = vrot.slane %v467, %v550
        %553 = vrot.lane.b32.xlu0 %v551, 4
        %v554 = vpop.permute.xlu0 %553
        %v556 = vmul.f32 %v522, %v554
        %558 = vrot.lane.b32.xlu0 %v556, 56
        %v559 = vpop.permute.xlu0 %558
        %v561 = vadd.f32 %v547, %v559
        %vm562 = vcmask 1045504
        %v563 = vrot.slane %v464, 2
        %v564 = vrot.slane %v465, 2
        %v565 = vsel %vm562, %v563, %v564
        %567 = vrot.lane.b32.xlu0 %v565, 64
        %v568 = vpop.permute.xlu0 %567
        %v569 = vsel %vm469, %v568, %v565
        %570 = vrot.lane.b32.xlu0 %v569, 64
        %v571 = vpop.permute.xlu0 %570
        %v572 = vsel %vm469, %v571, %v565
        %v573 = vlaneseq
        %v574 = vshrl.u32 %v573, 7
        %v575 = vsub.s32 0, %v574
        %v576 = vrot.slane %v468, %v575
        %578 = vrot.lane.b32.xlu0 %v576, 60
        %v579 = vpop.permute.xlu0 %578
        %v581 = vmul.f32 %v572, %v579
        %v582 = vadd.f32 %v561, %v581
        %v583 = vlaneseq
        %v584 = vshrl.u32 %v583, 7
        %v585 = vsub.s32 1, %v584
        %v586 = vrot.slane %v468, %v585
        %v587 = vmul.f32 %v464, %v586
        %v588 = vmul.f32 %v465, %v586
        %v591 = vrot.slane %v587, 2
        %v592 = vrot.slane %v588, 2
        %v593 = vsel %vm562, %v591, %v592
        %594 = vrot.lane.b32.xlu0 %v593, 60
        %v595 = vpop.permute.xlu0 %594
        %v597 = vadd.f32 %v582, %v595
        %v598 = vlaneseq
        %v599 = vshrl.u32 %v598, 7
        %v600 = vsub.s32 2, %v599
        %v601 = vrot.slane %v468, %v600
        %603 = vrot.lane.b32.xlu0 %v601, 4
        %v604 = vpop.permute.xlu0 %603
        %v606 = vmul.f32 %v572, %v604
        %608 = vrot.lane.b32.xlu0 %v606, 56
        %v609 = vpop.permute.xlu0 %608
        %v611 = vadd.f32 %v597, %v609
        %v612 = vld [vmem:[%s4] sm:$0x1]
        %v614 = vlaneseq
        %v615 = vshrl.u32 %v614, 7
        %v616 = vsub.s32 0, %v615
        %v617 = vrot.slane %v612, %v616
        %618 = vrot.lane.b32.xlu0 %v617, 60
        %v619 = vpop.permute.xlu0 %618
        %v621 = vadd.f32 %v611, %v619
        %v622 = vmax.f32 %v621, 0.0
        %v623 = vld [vmem:[#allocation10] sm:$0xff]
        %v624 = vld [vmem:[#allocation10 + $0x8] sm:$0xff]
        %v625 = vld [vmem:[#allocation10 + $0x10] sm:$0xff]
        %v626 = vld [vmem:[#allocation10 + $0x18] sm:$0xff]
        %v627 = vld [vmem:[#allocation10 + $0x20] sm:$0xff]
        %v628 = vld [vmem:[#allocation10 + $0x28] sm:$0xff]
        %v629 = vld [vmem:[#allocation10 + $0x30] sm:$0xff]
        %v630 = vld [vmem:[#allocation10 + $0x38] sm:$0xff]
        %v631 = vld [vmem:[%s6] sm:$0x1]
        %v633 = vlaneseq
        %v634 = vshrl.u32 %v633, 7
        %v635 = vsub.s32 0, %v634
        %v636 = vrot.slane %v631, %v635
        %639 = vrot.lane.b32.xlu0 %v622, 68
        %v640 = vpop.permute.xlu0 %639
        %vm641 = vcmask 523264
        %v642 = vsel %vm641, %v640, 0
        %644 = vmatprep.subr.mxu0 0.0
        %645 = vmatpush1.msra.mxu0 %v623
        %646 = vmatprep.subr.mxu0 0.0
        %647 = vmatpush1.msra.mxu0 %v624
        %648 = vmatprep.subr.mxu0 0.0
        %649 = vmatpush1.msra.mxu0 %v625
        %650 = vmatprep.subr.mxu0 0.0
        %651 = vmatpush1.msra.mxu0 %v626
        %652 = vmatprep.subr.mxu0 0.0
        %653 = vmatpush1.msra.mxu0 %v627
        %654 = vmatprep.subr.mxu0 0.0
        %655 = vmatpush1.msra.mxu0 %v628
        %656 = vmatprep.subr.mxu0 0.0
        %657 = vmatpush1.msra.mxu0 %v629
        %658 = vmatprep.subr.mxu0 0.0
        %659 = vmatpush1.msra.mxu0 %v630
        %660 = vmatprep.subr.mxu0 0.0
        %661 = vmatpush1.msra.mxu0 0.0
        %662 = vmatprep.subr.mxu0 0.0
        %663 = vmatpush1.msra.mxu0 0.0
        %664 = vmatprep.subr.mxu0 0.0
        %665 = vmatpush1.msra.mxu0 0.0
        %666 = vmatprep.subr.mxu0 0.0
        %667 = vmatpush1.msra.mxu0 0.0
        %668 = vmatprep.subr.mxu0 0.0
        %669 = vmatpush1.msra.mxu0 0.0
        %670 = vmatprep.subr.mxu0 0.0
        %671 = vmatpush1.msra.mxu0 0.0
        %672 = vmatprep.subr.mxu0 0.0
        %673 = vmatpush1.msra.mxu0 0.0
        %674 = vmatprep.subr.mxu0 0.0
        %675 = vmatpush1.msra.mxu0 0.0
        %676 = vmatprep.subr.mxu0 0.0
        %677 = vmatpush1.msra.mxu0 0.0
        %678 = vmatprep.subr.mxu0 0.0
        %679 = vmatpush1.msra.mxu0 0.0
        %680 = vmatprep.subr.mxu0 0.0
        %681 = vmatpush1.msra.mxu0 0.0
        %682 = vmatprep.subr.mxu0 0.0
        %683 = vmatpush1.msra.mxu0 0.0
        %684 = vmatprep.subr.mxu0 0.0
        %685 = vmatpush1.msra.mxu0 0.0
        %686 = vmatprep.subr.mxu0 0.0
        %687 = vmatpush1.msra.mxu0 0.0
        %688 = vmatprep.subr.mxu0 0.0
        %689 = vmatpush1.msra.mxu0 0.0
        %690 = vmatprep.subr.mxu0 0.0
        %691 = vmatpush1.msra.mxu0 0.0
        %692 = vmatprep.subr.mxu0 0.0
        %693 = vmatpush1.msra.mxu0 0.0
        %694 = vmatprep.subr.mxu0 0.0
        %695 = vmatpush1.msra.mxu0 0.0
        %696 = vmatprep.subr.mxu0 0.0
        %697 = vmatpush1.msra.mxu0 0.0
        %698 = vmatprep.subr.mxu0 0.0
        %699 = vmatpush1.msra.mxu0 0.0
        %700 = vmatprep.subr.mxu0 0.0
        %701 = vmatpush1.msra.mxu0 0.0
        %702 = vmatprep.subr.mxu0 0.0
        %703 = vmatpush1.msra.mxu0 0.0
        %704 = vmatprep.subr.mxu0 0.0
        %705 = vmatpush1.msra.mxu0 0.0
        %706 = vmatprep.subr.mxu0 0.0
        %707 = vmatpush1.msra.mxu0 0.0
        %708 = vmatprep.mubr.f32.mxu0 0.0
        %709 = vmatmul.mubr.f32.gmra.mrb[0].mxu0 %v642
        %v710 = vpop.f32.mrb[0].mxu0
        %v711 = vadd.f32 %v636, %v710
        %v712 = vpop.f32.mrb[0].mxu0
        %713 = vdwg.mxu0
        %v714 = vmax.f32 %v711, 0.0
        %715 = vst [vmem:[%s437] sm:$0xff] %v714
        %s716 = sand.u32 %s230, 1
        %s717 = scalar_lea.sflag [#allocation4], %s716
        %s718 = sand.u32 %s230, 1
        %s719 = smul.addr %s718, 8
        %s720 = scalar_lea.vmem [#allocation11], %s719
        // Predicated region
        $region69: #{tpu_custom_call.1} parent=47 // pred_check
          %p721 = pneg %p240
        $region70: #{tpu_custom_call.1} parent=47 // pred_check_branch
          %723 = sbr.rel (%p721) target = $region72
        $region71: #{tpu_custom_call.1} parent=47 // pred_region
          %s725 = ssub.s32 128, 128
          %726 = vsyncadd %s717, %s725
          %s727 = smul.addr %s32, 2
          %s728 = sadd.s32 %s33, %s727
          %s729 = smul.addr %s728, 128
          %s730 = scalar_lea.hbm %s7, %s729
          %s732 = sshll.u32 %s720, 4
          %s733 = int_to_ptr.vmem [resolvable:$true] %s732
          %735 = dma.vmem_to_hbm [thread:$0]  %s733, 128, %s730, %s717
        $region72: #{tpu_custom_call.1} parent=47 // pred_fallthru
          _
      $region48: #{tpu_custom_call.1} parent=5 // pred_fallthru
        _
      %p736 = scmp.le.s32.totalorder 2, %s23
      // Predicated region
      $region73: #{tpu_custom_call.1} parent=5 // pred_check
        %p737 = pneg %p736
      $region74: #{tpu_custom_call.1} parent=5 // pred_check_branch
        %739 = sbr.rel (%p737) target = $region76
      $region75: #{tpu_custom_call.1} parent=5 // pred_region
        %s740 = ssub.s32 %s23, 2
        // Predicated region
        $region77: #{tpu_custom_call.1} parent=75 // pred_check
          %p741 = pneg %p246
        $region78: #{tpu_custom_call.1} parent=75 // pred_check_branch
          %743 = sbr.rel (%p741) target = $region80
        $region79: #{tpu_custom_call.1} parent=75 // pred_region
          %s744 = sand.u32 %s231, 1
          %s745 = scalar_lea.sflag [#allocation4], %s744
          %s746 = sand.u32 %s231, 1
          %s747 = smul.addr %s746, 8
          %s748 = scalar_lea.vmem [#allocation11], %s747
          %749 = dma.done %s745, 128
        $region80: #{tpu_custom_call.1} parent=75 // pred_fallthru
          _
      $region76: #{tpu_custom_call.1} parent=5 // pred_fallthru
        _
    $region6: #{tpu_custom_call.1} parent=1 // loop_footer
      %s27 = sadd.s32 1, %s23
    $region7: #{tpu_custom_call.1} parent=1 // loop_footer_branch
      %22 = sbr.rel target = $region3
    $region8: #{tpu_custom_call.1} parent=1 // loop_exit
      _
    %750 = vsyncpa [#allocation3], 1
    %s751 = scalar_lea.sflag [#allocation3], 1
    %752 = vsyncpa %s751, 1
    %753 = vsyncpa [#allocation6], 1
    %s754 = scalar_lea.sflag [#allocation6], 1
    %755 = vsyncpa %s754, 1
    %756 = vsyncpa [#allocation9], 1
    %757 = vsyncpa [#allocation4], 1
    %s758 = scalar_lea.sflag [#allocation4], 1
    %759 = vsyncpa %s758, 1

// kernel: tpu_custom_call.1
$region0: #{tpu_custom_call.1}
  #allocation0 [shape = 'u32[]', space=smem, size = 0x4, offset = 0x4, fixed_abs, tag = 'smem constant byte address 0x4 - core index']
  #allocation1 [shape = 'u32[144,128]{1,0:T(1,128)}', space=vmem, size = 0x12000, scoped, tag = 'internal scratch']
  %s0 = inlined_call_operand.hbm [shape: f32[2,16,64], index: 0, kind: input, shape index: {}]
  %s1 = inlined_call_operand.hbm [shape: f32[2,16,64], index: 1, kind: input, shape index: {}]
  %s2 = inlined_call_operand.hbm [shape: f32[2,16,64], index: 2, kind: input, shape index: {}]
  %s3 = inlined_call_operand.hbm [shape: f32[3,3,64], index: 3, kind: input, shape index: {}]
  %s4 = inlined_call_operand.vmem [shape: f32[1,64], index: 4, kind: input, shape index: {}]
  %s5 = inlined_call_operand.hbm [shape: f32[64,128], index: 5, kind: input, shape index: {}]
  %s6 = inlined_call_operand.vmem [shape: f32[1,128], index: 6, kind: input, shape index: {}]
  %s7 = inlined_call_operand.hbm [shape: f32[2,16,128], index: 7, kind: output, shape index: {}]
  %s8 = sld [smem:[#allocation0]]
  $region81: #{tpu_custom_call.1} parent=0
    _
  %s10 = ssub.s32 1, %s8
  %s11 = scalar_select 0, %s10, %s8
  $region1: #{tpu_custom_call.1} parent=0
    #allocation2 [shape = 'u8[8192]{0}', space=vmem, size = 0x2000, scoped, tag = 'input window, operand 0']
    #allocation3 [shape = 's32[2]{0}', space=sflag, size = 0x8, scoped, tag = 'scoped memory for tpu_custom_call.1']
    #allocation4 [shape = 's32[2]{0}', space=sflag, size = 0x8, scoped, tag = 'scoped memory for tpu_custom_call.1']
    #allocation5 [shape = 'u8[8192]{0}', space=vmem, size = 0x2000, scoped, tag = 'input window, operand 1']
    #allocation6 [shape = 's32[2]{0}', space=sflag, size = 0x8, scoped, tag = 'scoped memory for tpu_custom_call.1']
    #allocation7 [shape = 'u8[8192]{0}', space=vmem, size = 0x2000, scoped, tag = 'input window, operand 2']
    #allocation8 [shape = 'u8[6144]{0}', space=vmem, size = 0x1800, scoped, tag = 'input window, operand 3, single buffered']
    #allocation9 [shape = 's32[1]{0}', space=sflag, size = 0x4, scoped, tag = 'scoped memory for tpu_custom_call.1']
    #allocation10 [shape = 'u8[32768]{0}', space=vmem, size = 0x8000, scoped, tag = 'input window, operand 5, single buffered']
    #allocation11 [shape = 'u8[8192]{0}', space=vmem, size = 0x2000, scoped, tag = 'output window, operand 0']
    %12 = vsyncpa [#allocation3], 0
    %s13 = scalar_lea.sflag [#allocation3], 1
    %14 = vsyncpa %s13, 0
    %15 = vsyncpa [#allocation6], 0
    %s16 = scalar_lea.sflag [#allocation6], 1
    %17 = vsyncpa %s16, 0
    %18 = vsyncpa [#allocation9], 0
    %19 = vsyncpa [#allocation4], 0
    %s20 = scalar_lea.sflag [#allocation4], 1
    %21 = vsyncpa %s20, 0
    loop: start=0, step=1, limit=6
    $region2: #{tpu_custom_call.1} parent=1 // loop_pre_header
      _
    $region3: #{tpu_custom_call.1} parent=1 // loop_header
      %s23 = sphi 0, %s27
      %p24 = scmp.ge.s32.totalorder %s23, 6
      %s30 = sphi 0, %s42
      %s31 = sphi 0, %s38
      %s32 = sphi 0, %s30
      %s33 = sphi 0, %s31
      %s34 = sphi 0, %s32
      %s35 = sphi 0, %s33
      %s47 = sphi 0, %s49
      %s50 = sphi 0, %s47
      %s51 = sphi 0, %s50
      %s67 = sphi 0, %s51
      %s81 = sphi 0, %s83
      %s84 = sphi 0, %s81
      %s85 = sphi 0, %s84
      %s101 = sphi 0, %s85
      %s115 = sphi 0, %s117
      %s118 = sphi 0, %s115
      %s119 = sphi 0, %s118
      %s135 = sphi 0, %s119
      %s139 = sphi 0, %s139
      %s141 = sphi 0, %s139
      %s142 = sphi 0, %s141
      %s156 = sphi 0, %s142
      %s160 = sphi 0, %s160
      %s162 = sphi 0, %s160
      %s163 = sphi 0, %s162
      %s177 = sphi 0, %s163
      %s181 = sphi 0, %s181
      %s183 = sphi 0, %s181
      %s184 = sphi 0, %s183
      %s198 = sphi 0, %s184
      %s202 = sphi 0, %s202
      %s204 = sphi 0, %s202
      %s205 = sphi 0, %s204
      %s219 = sphi 0, %s205
      %s227 = sphi 0, %s229
      %s230 = sphi 0, %s227
      %s231 = sphi 0, %s230
      %s247 = sphi 0, %s231
    $region4: #{tpu_custom_call.1} parent=1 // loop_header_branch
      %26 = sbr.rel (%p24) target = $region8
    $region5: #{tpu_custom_call.1} parent=1 // loop_body
      %s28 = ssub.s32 %s23, 1
      %s29 = ssub.s32 %s23, 2
      %s36 = sadd.s32 1, %s31
      %p37 = scmp.ge.s32.totalorder %s36, 2
      %s38 = scalar_select %p37, 0, %s36
      %s39 = sadd.s32 1, %s30
      %s40 = scalar_select %p37, %s39, %s30
      %p41 = scmp.ge.s32.totalorder %s40, 2
      %s42 = scalar_select %p41, 0, %s40
      %s43 = ssub.s32 %s30, %s42
      %s44 = ssub.s32 %s31, %s38
      %s45 = sor.u32 %s43, %s44
      %p46 = scmp.eq.s32.totalorder %s45, 0
      %s48 = sadd.s32 %s47, 1
      %s49 = scalar_select %p46, %s47, %s48
      %p52 = pneg %p46
      %p53 = scmp.eq.s32.totalorder %s23, 3
      %p54 = por %p52, %p53
      %p55 = scmp.ne.s32.totalorder %s47, %s50
      %p56 = scmp.eq.s32.totalorder %s23, 0
      %p57 = por %p55, %p56
      %p58 = scmp.ne.s32.totalorder %s47, %s50
      %p59 = scmp.eq.s32.totalorder %s28, 3
      %p60 = por %p58, %p59
      %p61 = scmp.ne.s32.totalorder %s50, %s51
      %p62 = scmp.eq.s32.totalorder %s28, 0
      %p63 = por %p61, %p62
      %p64 = scmp.ne.s32.totalorder %s50, %s51
      %p65 = scmp.eq.s32.totalorder %s29, 3
      %p66 = por %p64, %p65
      %p68 = scmp.ne.s32.totalorder %s51, %s67
      %p69 = scmp.eq.s32.totalorder %s29, 0
      %p70 = por %p68, %p69
      %s71 = ssub.s32 %s31, 1
      %p72 = scmp.gt.s32.totalorder %s71, 0
      %s73 = scalar_select %p72, %s71, 0
      %s74 = ssub.s32 %s38, 1
      %p75 = scmp.gt.s32.totalorder %s74, 0
      %s76 = scalar_select %p75, %s74, 0
      %s77 = ssub.s32 %s30, %s42
      %s78 = ssub.s32 %s73, %s76
      %s79 = sor.u32 %s77, %s78
      %p80 = scmp.eq.s32.totalorder %s79, 0
      %s82 = sadd.s32 %s81, 1
      %s83 = scalar_select %p80, %s81, %s82
      %p86 = pneg %p80
      %p87 = scmp.eq.s32.totalorder %s23, 3
      %p88 = por %p86, %p87
      %p89 = scmp.ne.s32.totalorder %s81, %s84
      %p90 = scmp.eq.s32.totalorder %s23, 0
      %p91 = por %p89, %p90
      %p92 = scmp.ne.s32.totalorder %s81, %s84
      %p93 = scmp.eq.s32.totalorder %s28, 3
      %p94 = por %p92, %p93
      %p95 = scmp.ne.s32.totalorder %s84, %s85
      %p96 = scmp.eq.s32.totalorder %s28, 0
      %p97 = por %p95, %p96
      %p98 = scmp.ne.s32.totalorder %s84, %s85
      %p99 = scmp.eq.s32.totalorder %s29, 3
      %p100 = por %p98, %p99
      %p102 = scmp.ne.s32.totalorder %s85, %s101
      %p103 = scmp.eq.s32.totalorder %s29, 0
      %p104 = por %p102, %p103
      %s105 = sadd.s32 %s31, 1
      %p106 = scmp.lt.s32.totalorder %s105, 1
      %s107 = scalar_select %p106, %s105, 1
      %s108 = sadd.s32 %s38, 1
      %p109 = scmp.lt.s32.totalorder %s108, 1
      %s110 = scalar_select %p109, %s108, 1
      %s111 = ssub.s32 %s30, %s42
      %s112 = ssub.s32 %s107, %s110
      %s113 = sor.u32 %s111, %s112
      %p114 = scmp.eq.s32.totalorder %s113, 0
      %s116 = sadd.s32 %s115, 1
      %s117 = scalar_select %p114, %s115, %s116
      %p120 = pneg %p114
      %p121 = scmp.eq.s32.totalorder %s23, 3
      %p122 = por %p120, %p121
      %p123 = scmp.ne.s32.totalorder %s115, %s118
      %p124 = scmp.eq.s32.totalorder %s23, 0
      %p125 = por %p123, %p124
      %p126 = scmp.ne.s32.totalorder %s115, %s118
      %p127 = scmp.eq.s32.totalorder %s28, 3
      %p128 = por %p126, %p127
      %p129 = scmp.ne.s32.totalorder %s118, %s119
      %p130 = scmp.eq.s32.totalorder %s28, 0
      %p131 = por %p129, %p130
      %p132 = scmp.ne.s32.totalorder %s118, %s119
      %p133 = scmp.eq.s32.totalorder %s29, 3
      %p134 = por %p132, %p133
      %p136 = scmp.ne.s32.totalorder %s119, %s135
      %p137 = scmp.eq.s32.totalorder %s29, 0
      %p138 = por %p136, %p137
      %s140 = sadd.s32 %s139, 1
      %p143 = scmp.eq.s32.totalorder %s23, 3
      %p144 = scmp.ne.s32.totalorder %s139, %s141
      %p145 = scmp.eq.s32.totalorder %s23, 0
      %p146 = por %p144, %p145
      %p147 = scmp.ne.s32.totalorder %s139, %s141
      %p148 = scmp.eq.s32.totalorder %s28, 3
      %p149 = por %p147, %p148
      %p150 = scmp.ne.s32.totalorder %s141, %s142
      %p151 = scmp.eq.s32.totalorder %s28, 0
      %p152 = por %p150, %p151
      %p153 = scmp.ne.s32.totalorder %s141, %s142
      %p154 = scmp.eq.s32.totalorder %s29, 3
      %p155 = por %p153, %p154
      %p157 = scmp.ne.s32.totalorder %s142, %s156
      %p158 = scmp.eq.s32.totalorder %s29, 0
      %p159 = por %p157, %p158
      %s161 = sadd.s32 %s160, 1
      %p164 = scmp.eq.s32.totalorder %s23, 3
      %p165 = scmp.ne.s32.totalorder %s160, %s162
      %p166 = scmp.eq.s32.totalorder %s23, 0
      %p167 = por %p165, %p166
      %p168 = scmp.ne.s32.totalorder %s160, %s162
      %p169 = scmp.eq.s32.totalorder %s28, 3
      %p170 = por %p168, %p169
      %p171 = scmp.ne.s32.totalorder %s162, %s163
      %p172 = scmp.eq.s32.totalorder %s28, 0
      %p173 = por %p171, %p172
      %p174 = scmp.ne.s32.totalorder %s162, %s163
      %p175 = scmp.eq.s32.totalorder %s29, 3
      %p176 = por %p174, %p175
      %p178 = scmp.ne.s32.totalorder %s163, %s177
      %p179 = scmp.eq.s32.totalorder %s29, 0
      %p180 = por %p178, %p179
      %s182 = sadd.s32 %s181, 1
      %p185 = scmp.eq.s32.totalorder %s23, 3
      %p186 = scmp.ne.s32.totalorder %s181, %s183
      %p187 = scmp.eq.s32.totalorder %s23, 0
      %p188 = por %p186, %p187
      %p189 = scmp.ne.s32.totalorder %s181, %s183
      %p190 = scmp.eq.s32.totalorder %s28, 3
      %p191 = por %p189, %p190
      %p192 = scmp.ne.s32.totalorder %s183, %s184
      %p193 = scmp.eq.s32.totalorder %s28, 0
      %p194 = por %p192, %p193
      %p195 = scmp.ne.s32.totalorder %s183, %s184
      %p196 = scmp.eq.s32.totalorder %s29, 3
      %p197 = por %p195, %p196
      %p199 = scmp.ne.s32.totalorder %s184, %s198
      %p200 = scmp.eq.s32.totalorder %s29, 0
      %p201 = por %p199, %p200
      %s203 = sadd.s32 %s202, 1
      %p206 = scmp.eq.s32.totalorder %s23, 3
      %p207 = scmp.ne.s32.totalorder %s202, %s204
      %p208 = scmp.eq.s32.totalorder %s23, 0
      %p209 = por %p207, %p208
      %p210 = scmp.ne.s32.totalorder %s202, %s204
      %p211 = scmp.eq.s32.totalorder %s28, 3
      %p212 = por %p210, %p211
      %p213 = scmp.ne.s32.totalorder %s204, %s205
      %p214 = scmp.eq.s32.totalorder %s28, 0
      %p215 = por %p213, %p214
      %p216 = scmp.ne.s32.totalorder %s204, %s205
      %p217 = scmp.eq.s32.totalorder %s29, 3
      %p218 = por %p216, %p217
      %p220 = scmp.ne.s32.totalorder %s205, %s219
      %p221 = scmp.eq.s32.totalorder %s29, 0
      %p222 = por %p220, %p221
      %s223 = ssub.s32 %s30, %s42
      %s224 = ssub.s32 %s31, %s38
      %s225 = sor.u32 %s223, %s224
      %p226 = scmp.eq.s32.totalorder %s225, 0
      %s228 = sadd.s32 %s227, 1
      %s229 = scalar_select %p226, %s227, %s228
      %p232 = pneg %p226
      %p233 = scmp.eq.s32.totalorder %s23, 3
      %p234 = por %p232, %p233
      %p235 = scmp.ne.s32.totalorder %s227, %s230
      %p236 = scmp.eq.s32.totalorder %s23, 0
      %p237 = por %p235, %p236
      %p238 = scmp.ne.s32.totalorder %s227, %s230
      %p239 = scmp.eq.s32.totalorder %s28, 3
      %p240 = por %p238, %p239
      %p241 = scmp.ne.s32.totalorder %s230, %s231
      %p242 = scmp.eq.s32.totalorder %s28, 0
      %p243 = por %p241, %p242
      %p244 = scmp.ne.s32.totalorder %s230, %s231
      %p245 = scmp.eq.s32.totalorder %s29, 3
      %p246 = por %p244, %p245
      %p248 = scmp.ne.s32.totalorder %s231, %s247
      %p249 = scmp.eq.s32.totalorder %s29, 0
      %p250 = por %p248, %p249
      %p251 = scmp.le.s32.totalorder 1, %s23
      %p252 = scmp.lt.s32.totalorder %s23, 5
      %p253 = pnand %p251, %p252
      %p254 = pneg %p253
      // Predicated region
      $region9: #{tpu_custom_call.1} parent=5 // pred_check
        _
      $region10: #{tpu_custom_call.1} parent=5 // pred_check_branch
        %256 = sbr.rel (%p253) target = $region12
      $region11: #{tpu_custom_call.1} parent=5 // pred_region
        %s257 = ssub.s32 %s23, 1
        // Predicated region
        $region13: #{tpu_custom_call.1} parent=11 // pred_check
          %p258 = pneg %p152
        $region14: #{tpu_custom_call.1} parent=11 // pred_check_branch
          %260 = sbr.rel (%p258) target = $region16
        $region15: #{tpu_custom_call.1} parent=11 // pred_region
          %s262 = ssub.s32 192, 192
          %263 = vsyncadd [#allocation9], %s262
          %s264 = sshll.u32 [#allocation8], 4
          %s265 = int_to_ptr.vmem [resolvable:$true] %s264
          %270 = dma.hbm_to_vmem [thread:$0]  %s3, 192, %s265, [#allocation9], 64, 64, 4
        $region16: #{tpu_custom_call.1} parent=11 // pred_fallthru
          _
        // Predicated region
        $region17: #{tpu_custom_call.1} parent=11 // pred_check
          %p271 = pneg %p173
        $region18: #{tpu_custom_call.1} parent=11 // pred_check_branch
          %273 = sbr.rel (%p271) target = $region20
        $region19: #{tpu_custom_call.1} parent=11 // pred_region
          _
        $region20: #{tpu_custom_call.1} parent=11 // pred_fallthru
          _
        // Predicated region
        $region21: #{tpu_custom_call.1} parent=11 // pred_check
          %p274 = pneg %p194
        $region22: #{tpu_custom_call.1} parent=11 // pred_check_branch
          %276 = sbr.rel (%p274) target = $region24
        $region23: #{tpu_custom_call.1} parent=11 // pred_region
          %s278 = ssub.s32 1024, 1024
          %279 = vsyncadd [#allocation9], %s278
          %s280 = sshll.u32 [#allocation10], 4
          %s281 = int_to_ptr.vmem [resolvable:$true] %s280
          %286 = dma.hbm_to_vmem [thread:$0]  %s5, 1024, %s281, [#allocation9], 128, 128, 8
        $region24: #{tpu_custom_call.1} parent=11 // pred_fallthru
          _
        // Predicated region
        $region25: #{tpu_custom_call.1} parent=11 // pred_check
          %p287 = pneg %p215
        $region26: #{tpu_custom_call.1} parent=11 // pred_check_branch
          %289 = sbr.rel (%p287) target = $region28
        $region27: #{tpu_custom_call.1} parent=11 // pred_region
          _
        $region28: #{tpu_custom_call.1} parent=11 // pred_fallthru
          _
      $region12: #{tpu_custom_call.1} parent=5 // pred_fallthru
        _
      %p290 = scmp.lt.s32.totalorder %s23, 4
      // Predicated region
      $region29: #{tpu_custom_call.1} parent=5 // pred_check
        %p291 = pneg %p290
      $region30: #{tpu_custom_call.1} parent=5 // pred_check_branch
        %293 = sbr.rel (%p291) target = $region32
      $region31: #{tpu_custom_call.1} parent=5 // pred_region
        // Predicated region
        $region33: #{tpu_custom_call.1} parent=31 // pred_check
          %p294 = pneg %p57
        $region34: #{tpu_custom_call.1} parent=31 // pred_check_branch
          %296 = sbr.rel (%p294) target = $region36
        $region35: #{tpu_custom_call.1} parent=31 // pred_region
          %s297 = sand.u32 %s47, 1
          %s298 = scalar_lea.sflag [#allocation3], %s297
          %s299 = sand.u32 %s47, 1
          %s300 = smul.addr %s299, 8
          %s301 = scalar_lea.vmem [#allocation2], %s300
          %s303 = ssub.s32 128, 128
          %304 = vsyncadd %s298, %s303
          %s305 = smul.addr %s30, 2
          %s306 = sadd.s32 %s31, %s305
          %s307 = smul.addr %s306, 128
          %s308 = scalar_lea.hbm %s0, %s307
          %s310 = sshll.u32 %s301, 4
          %s311 = int_to_ptr.vmem [resolvable:$true] %s310
          %313 = dma.hbm_to_vmem [thread:$0]  %s308, 128, %s311, %s298
        $region36: #{tpu_custom_call.1} parent=31 // pred_fallthru
          _
        // Predicated region
        $region37: #{tpu_custom_call.1} parent=31 // pred_check
          %p314 = pneg %p91
        $region38: #{tpu_custom_call.1} parent=31 // pred_check_branch
          %316 = sbr.rel (%p314) target = $region40
        $region39: #{tpu_custom_call.1} parent=31 // pred_region
          %s317 = sand.u32 %s23, 1
          %s318 = scalar_lea.sflag [#allocation6], %s317
          %s319 = sand.u32 %s81, 1
          %s320 = smul.addr %s319, 8
          %s321 = scalar_lea.vmem [#allocation5], %s320
          %s322 = ssub.s32 %s31, 1
          %p323 = scmp.gt.s32.totalorder %s322, 0
          %s324 = scalar_select %p323, %s322, 0
          %s326 = ssub.s32 128, 128
          %327 = vsyncadd %s318, %s326
          %s328 = smul.addr %s30, 2
          %s329 = sadd.s32 %s324, %s328
          %s330 = smul.addr %s329, 128
          %s331 = scalar_lea.hbm %s1, %s330
          %s333 = sshll.u32 %s321, 4
          %s334 = int_to_ptr.vmem [resolvable:$true] %s333
          %336 = dma.hbm_to_vmem [thread:$0]  %s331, 128, %s334, %s318
        $region40: #{tpu_custom_call.1} parent=31 // pred_fallthru
          _
        // Predicated region
        $region41: #{tpu_custom_call.1} parent=31 // pred_check
          %p337 = pneg %p125
        $region42: #{tpu_custom_call.1} parent=31 // pred_check_branch
          %339 = sbr.rel (%p337) target = $region44
        $region43: #{tpu_custom_call.1} parent=31 // pred_region
          %s340 = sand.u32 %s23, 1
          %s341 = scalar_lea.sflag [#allocation6], %s340
          %s342 = sand.u32 %s115, 1
          %s343 = smul.addr %s342, 8
          %s344 = scalar_lea.vmem [#allocation7], %s343
          %s345 = sadd.s32 %s31, 1
          %p346 = scmp.lt.s32.totalorder %s345, 1
          %s347 = scalar_select %p346, %s345, 1
          %s349 = ssub.s32 128, 128
          %350 = vsyncadd %s341, %s349
          %s351 = smul.addr %s30, 2
          %s352 = sadd.s32 %s347, %s351
          %s353 = smul.addr %s352, 128
          %s354 = scalar_lea.hbm %s2, %s353
          %s356 = sshll.u32 %s344, 4
          %s357 = int_to_ptr.vmem [resolvable:$true] %s356
          %359 = dma.hbm_to_vmem [thread:$0]  %s354, 128, %s357, %s341
        $region44: #{tpu_custom_call.1} parent=31 // pred_fallthru
          _
      $region32: #{tpu_custom_call.1} parent=5 // pred_fallthru
        _
      %p360 = scmp.le.s32.totalorder 1, %s23
      %p361 = scmp.lt.s32.totalorder %s23, 5
      %p362 = pnand %p360, %p361
      %p363 = pneg %p362
      // Predicated region
      $region45: #{tpu_custom_call.1} parent=5 // pred_check
        _
      $region46: #{tpu_custom_call.1} parent=5 // pred_check_branch
        %365 = sbr.rel (%p362) target = $region48
      $region47: #{tpu_custom_call.1} parent=5 // pred_region
        %s366 = ssub.s32 %s23, 1
        %s367 = sand.u32 %s50, 1
        %s368 = scalar_lea.sflag [#allocation3], %s367
        %s369 = sand.u32 %s50, 1
        %s370 = smul.addr %s369, 8
        %s371 = scalar_lea.vmem [#allocation2], %s370
        // Predicated region
        $region49: #{tpu_custom_call.1} parent=47 // pred_check
          %p372 = pneg %p63
        $region50: #{tpu_custom_call.1} parent=47 // pred_check_branch
          %374 = sbr.rel (%p372) target = $region52
        $region51: #{tpu_custom_call.1} parent=47 // pred_region
          %375 = dma.done %s368, 128
        $region52: #{tpu_custom_call.1} parent=47 // pred_fallthru
          _
        %s376 = sand.u32 %s28, 1
        %s377 = scalar_lea.sflag [#allocation6], %s376
        %s378 = sand.u32 %s84, 1
        %s379 = smul.addr %s378, 8
        %s380 = scalar_lea.vmem [#allocation5], %s379
        // Predicated region
        $region53: #{tpu_custom_call.1} parent=47 // pred_check
          %p381 = pneg %p97
        $region54: #{tpu_custom_call.1} parent=47 // pred_check_branch
          %383 = sbr.rel (%p381) target = $region56
        $region55: #{tpu_custom_call.1} parent=47 // pred_region
          %384 = dma.done %s377, 128
        $region56: #{tpu_custom_call.1} parent=47 // pred_fallthru
          _
        %s385 = sand.u32 %s28, 1
        %s386 = scalar_lea.sflag [#allocation6], %s385
        %s387 = sand.u32 %s118, 1
        %s388 = smul.addr %s387, 8
        %s389 = scalar_lea.vmem [#allocation7], %s388
        // Predicated region
        $region57: #{tpu_custom_call.1} parent=47 // pred_check
          %p390 = pneg %p131
        $region58: #{tpu_custom_call.1} parent=47 // pred_check_branch
          %392 = sbr.rel (%p390) target = $region60
        $region59: #{tpu_custom_call.1} parent=47 // pred_region
          %393 = dma.done %s386, 128
        $region60: #{tpu_custom_call.1} parent=47 // pred_fallthru
          _
        // Predicated region
        $region61: #{tpu_custom_call.1} parent=47 // pred_check
          %p394 = pneg %p152
        $region62: #{tpu_custom_call.1} parent=47 // pred_check_branch
          %396 = sbr.rel (%p394) target = $region64
        $region63: #{tpu_custom_call.1} parent=47 // pred_region
          %397 = dma.done [#allocation9], 192
        $region64: #{tpu_custom_call.1} parent=47 // pred_fallthru
          _
        // Predicated region
        $region65: #{tpu_custom_call.1} parent=47 // pred_check
          %p398 = pneg %p194
        $region66: #{tpu_custom_call.1} parent=47 // pred_check_branch
          %400 = sbr.rel (%p398) target = $region68
        $region67: #{tpu_custom_call.1} parent=47 // pred_region
          %401 = dma.done [#allocation9], 1024
        $region68: #{tpu_custom_call.1} parent=47 // pred_fallthru
          _
        %s402 = sand.u32 %s50, 1
        %s403 = scalar_lea.sflag [#allocation3], %s402
        %s404 = sand.u32 %s50, 1
        %s405 = smul.addr %s404, 8
        %s406 = scalar_lea.vmem [#allocation2], %s405
        %p407 = pneg %p63
        %p408 = pneg %p60
        %s409 = sand.u32 %s28, 1
        %s410 = scalar_lea.sflag [#allocation6], %s409
        %s411 = sand.u32 %s84, 1
        %s412 = smul.addr %s411, 8
        %s413 = scalar_lea.vmem [#allocation5], %s412
        %p414 = pneg %p97
        %p415 = pneg %p94
        %s416 = sand.u32 %s28, 1
        %s417 = scalar_lea.sflag [#allocation6], %s416
        %s418 = sand.u32 %s118, 1
        %s419 = smul.addr %s418, 8
        %s420 = scalar_lea.vmem [#allocation7], %s419
        %p421 = pneg %p131
        %p422 = pneg %p128
        %p423 = pneg %p152
        %p424 = pneg %p149
        %p425 = pneg %p173
        %p426 = pneg %p170
        %p427 = pneg %p194
        %p428 = pneg %p191
        %p429 = pneg %p215
        %p430 = pneg %p212
        %p431 = pneg %p243
        %p432 = pneg %p240
        %s433 = sand.u32 %s230, 1
        %s434 = scalar_lea.sflag [#allocation4], %s433
        %s435 = sand.u32 %s230, 1
        %s436 = smul.addr %s435, 8
        %s437 = scalar_lea.vmem [#allocation11], %s436
        %s438 = ssub.s32 %s33, 1
        %p439 = scmp.gt.s32.totalorder %s438, 0
        %s440 = scalar_select %p439, %s438, 0
        %s441 = sadd.s32 %s33, 1
        %p442 = scmp.lt.s32.totalorder %s441, 1
        %s443 = scalar_select %p442, %s441, 1
        %v444 = vld [vmem:[%s371] sm:$0xff]
        %v445 = vld [vmem:[%s380 + $0x7] sm:$0x1]
        %p446 = scmp.gt.s32.totalorder %s33, 0
        %s447 = scalar_select %p446, 1, 0
        %s448 = scvt.s32.f32 %s447
        %v449 = vstv %s448
        %v450 = vmul.f32 %v445, %v449
        %v451 = vld [vmem:[%s389] sm:$0x1]
        %p452 = scmp.lt.s32.totalorder %s33, 1
        %s453 = scalar_select %p452, 1, 0
        %s454 = scvt.s32.f32 %s453
        %v455 = vstv %s454
        %v456 = vmul.f32 %v451, %v455
        %v458 = vrot.slane %v444, 7
        %v461 = vrot.slane %v456, 7
        %vm463 = vcmask 1040384
        %v464 = vsel %vm463, %v450, %v458
        %v465 = vsel %vm463, %v458, %v461
        %v466 = vld [vmem:[#allocation8] sm:$0x7]
        %v467 = vld [vmem:[#allocation8 + $0x4] sm:$0x7]
        %v468 = vld [vmem:[#allocation8 + $0x8] sm:$0x7]
        %vm469 = vcmask 1048064
        %470 = vrot.lane.b32.xlu0 %v464, 64
        %v471 = vpop.permute.xlu0 %470
        %v472 = vsel %vm469, %v471, %v464
        %473 = vrot.lane.b32.xlu0 %v472, 64
        %v474 = vpop.permute.xlu0 %473
        %v475 = vsel %vm469, %v474, %v464
        %v476 = vlaneseq
        %v477 = vshrl.u32 %v476, 7
        %v478 = vsub.s32 0, %v477
        %v479 = vrot.slane %v466, %v478
        %481 = vrot.lane.b32.xlu0 %v479, 60
        %v482 = vpop.permute.xlu0 %481
        %v484 = vmul.f32 %v475, %v482
        %v485 = vadd.f32 %v484, 0.0
        %v486 = vlaneseq
        %v487 = vshrl.u32 %v486, 7
        %v488 = vsub.s32 1, %v487
        %v489 = vrot.slane %v466, %v488
        %v490 = vmul.f32 %v464, %v489
        %492 = vrot.lane.b32.xlu0 %v490, 60
        %v493 = vpop.permute.xlu0 %492
        %v495 = vadd.f32 %v485, %v493
        %v496 = vlaneseq
        %v497 = vshrl.u32 %v496, 7
        %v498 = vsub.s32 2, %v497
        %v499 = vrot.slane %v466, %v498
        %501 = vrot.lane.b32.xlu0 %v499, 4
        %v502 = vpop.permute.xlu0 %501
        %v504 = vmul.f32 %v475, %v502
        %506 = vrot.lane.b32.xlu0 %v504, 56
        %v507 = vpop.permute.xlu0 %506
        %v509 = vadd.f32 %v495, %v507
        %vm512 = vcmask 1046528
        %v513 = vrot.slane %v464, 1
        %v514 = vrot.slane %v465, 1
        %v515 = vsel %vm512, %v513, %v514
        %517 = vrot.lane.b32.xlu0 %v515, 64
        %v518 = vpop.permute.xlu0 %517
        %v519 = vsel %vm469, %v518, %v515
        %520 = vrot.lane.b32.xlu0 %v519, 64
        %v521 = vpop.permute.xlu0 %520
        %v522 = vsel %vm469, %v521, %v515
        %v523 = vlaneseq
        %v524 = vshrl.u32 %v523, 7
        %v525 = vsub.s32 0, %v524
        %v526 = vrot.slane %v467, %v525
        %528 = vrot.lane.b32.xlu0 %v526, 60
        %v529 = vpop.permute.xlu0 %528
        %v531 = vmul.f32 %v522, %v529
        %v532 = vadd.f32 %v509, %v531
        %v533 = vlaneseq
        %v534 = vshrl.u32 %v533, 7
        %v535 = vsub.s32 1, %v534
        %v536 = vrot.slane %v467, %v535
        %v537 = vmul.f32 %v464, %v536
        %v538 = vmul.f32 %v465, %v536
        %v541 = vrot.slane %v537, 1
        %v542 = vrot.slane %v538, 1
        %v543 = vsel %vm512, %v541, %v542
        %544 = vrot.lane.b32.xlu0 %v543, 60
        %v545 = vpop.permute.xlu0 %544
        %v547 = vadd.f32 %v532, %v545
        %v548 = vlaneseq
        %v549 = vshrl.u32 %v548, 7
        %v550 = vsub.s32 2, %v549
        %v551 = vrot.slane %v467, %v550
        %553 = vrot.lane.b32.xlu0 %v551, 4
        %v554 = vpop.permute.xlu0 %553
        %v556 = vmul.f32 %v522, %v554
        %558 = vrot.lane.b32.xlu0 %v556, 56
        %v559 = vpop.permute.xlu0 %558
        %v561 = vadd.f32 %v547, %v559
        %vm562 = vcmask 1045504
        %v563 = vrot.slane %v464, 2
        %v564 = vrot.slane %v465, 2
        %v565 = vsel %vm562, %v563, %v564
        %567 = vrot.lane.b32.xlu0 %v565, 64
        %v568 = vpop.permute.xlu0 %567
        %v569 = vsel %vm469, %v568, %v565
        %570 = vrot.lane.b32.xlu0 %v569, 64
        %v571 = vpop.permute.xlu0 %570
        %v572 = vsel %vm469, %v571, %v565
        %v573 = vlaneseq
        %v574 = vshrl.u32 %v573, 7
        %v575 = vsub.s32 0, %v574
        %v576 = vrot.slane %v468, %v575
        %578 = vrot.lane.b32.xlu0 %v576, 60
        %v579 = vpop.permute.xlu0 %578
        %v581 = vmul.f32 %v572, %v579
        %v582 = vadd.f32 %v561, %v581
        %v583 = vlaneseq
        %v584 = vshrl.u32 %v583, 7
        %v585 = vsub.s32 1, %v584
        %v586 = vrot.slane %v468, %v585
        %v587 = vmul.f32 %v464, %v586
        %v588 = vmul.f32 %v465, %v586
        %v591 = vrot.slane %v587, 2
        %v592 = vrot.slane %v588, 2
        %v593 = vsel %vm562, %v591, %v592
        %594 = vrot.lane.b32.xlu0 %v593, 60
        %v595 = vpop.permute.xlu0 %594
        %v597 = vadd.f32 %v582, %v595
        %v598 = vlaneseq
        %v599 = vshrl.u32 %v598, 7
        %v600 = vsub.s32 2, %v599
        %v601 = vrot.slane %v468, %v600
        %603 = vrot.lane.b32.xlu0 %v601, 4
        %v604 = vpop.permute.xlu0 %603
        %v606 = vmul.f32 %v572, %v604
        %608 = vrot.lane.b32.xlu0 %v606, 56
        %v609 = vpop.permute.xlu0 %608
        %v611 = vadd.f32 %v597, %v609
        %v612 = vld [vmem:[%s4] sm:$0x1]
        %v614 = vlaneseq
        %v615 = vshrl.u32 %v614, 7
        %v616 = vsub.s32 0, %v615
        %v617 = vrot.slane %v612, %v616
        %618 = vrot.lane.b32.xlu0 %v617, 60
        %v619 = vpop.permute.xlu0 %618
        %v621 = vadd.f32 %v611, %v619
        %v622 = vmax.f32 %v621, 0.0
        %v623 = vld [vmem:[#allocation10] sm:$0xff]
        %v624 = vld [vmem:[#allocation10 + $0x8] sm:$0xff]
        %v625 = vld [vmem:[#allocation10 + $0x10] sm:$0xff]
        %v626 = vld [vmem:[#allocation10 + $0x18] sm:$0xff]
        %v627 = vld [vmem:[#allocation10 + $0x20] sm:$0xff]
        %v628 = vld [vmem:[#allocation10 + $0x28] sm:$0xff]
        %v629 = vld [vmem:[#allocation10 + $0x30] sm:$0xff]
        %v630 = vld [vmem:[#allocation10 + $0x38] sm:$0xff]
        %v631 = vld [vmem:[%s6] sm:$0x1]
        %v633 = vlaneseq
        %v634 = vshrl.u32 %v633, 7
        %v635 = vsub.s32 0, %v634
        %v636 = vrot.slane %v631, %v635
        %639 = vrot.lane.b32.xlu0 %v622, 68
        %v640 = vpop.permute.xlu0 %639
        %vm641 = vcmask 523264
        %v642 = vsel %vm641, %v640, 0
        %644 = vmatprep.subr.mxu0 0.0
        %645 = vmatpush1.msra.mxu0 %v623
        %646 = vmatprep.subr.mxu0 0.0
        %647 = vmatpush1.msra.mxu0 %v624
        %648 = vmatprep.subr.mxu0 0.0
        %649 = vmatpush1.msra.mxu0 %v625
        %650 = vmatprep.subr.mxu0 0.0
        %651 = vmatpush1.msra.mxu0 %v626
        %652 = vmatprep.subr.mxu0 0.0
        %653 = vmatpush1.msra.mxu0 %v627
        %654 = vmatprep.subr.mxu0 0.0
        %655 = vmatpush1.msra.mxu0 %v628
        %656 = vmatprep.subr.mxu0 0.0
        %657 = vmatpush1.msra.mxu0 %v629
        %658 = vmatprep.subr.mxu0 0.0
        %659 = vmatpush1.msra.mxu0 %v630
        %660 = vmatprep.subr.mxu0 0.0
        %661 = vmatpush1.msra.mxu0 0.0
        %662 = vmatprep.subr.mxu0 0.0
        %663 = vmatpush1.msra.mxu0 0.0
        %664 = vmatprep.subr.mxu0 0.0
        %665 = vmatpush1.msra.mxu0 0.0
        %666 = vmatprep.subr.mxu0 0.0
        %667 = vmatpush1.msra.mxu0 0.0
        %668 = vmatprep.subr.mxu0 0.0
        %669 = vmatpush1.msra.mxu0 0.0
        %670 = vmatprep.subr.mxu0 0.0
        %671 = vmatpush1.msra.mxu0 0.0
        %672 = vmatprep.subr.mxu0 0.0
        %673 = vmatpush1.msra.mxu0 0.0
        %674 = vmatprep.subr.mxu0 0.0
        %675 = vmatpush1.msra.mxu0 0.0
        %676 = vmatprep.subr.mxu0 0.0
        %677 = vmatpush1.msra.mxu0 0.0
        %678 = vmatprep.subr.mxu0 0.0
        %679 = vmatpush1.msra.mxu0 0.0
        %680 = vmatprep.subr.mxu0 0.0
        %681 = vmatpush1.msra.mxu0 0.0
        %682 = vmatprep.subr.mxu0 0.0
        %683 = vmatpush1.msra.mxu0 0.0
        %684 = vmatprep.subr.mxu0 0.0
        %685 = vmatpush1.msra.mxu0 0.0
        %686 = vmatprep.subr.mxu0 0.0
        %687 = vmatpush1.msra.mxu0 0.0
        %688 = vmatprep.subr.mxu0 0.0
        %689 = vmatpush1.msra.mxu0 0.0
        %690 = vmatprep.subr.mxu0 0.0
        %691 = vmatpush1.msra.mxu0 0.0
        %692 = vmatprep.subr.mxu0 0.0
        %693 = vmatpush1.msra.mxu0 0.0
        %694 = vmatprep.subr.mxu0 0.0
        %695 = vmatpush1.msra.mxu0 0.0
        %696 = vmatprep.subr.mxu0 0.0
        %697 = vmatpush1.msra.mxu0 0.0
        %698 = vmatprep.subr.mxu0 0.0
        %699 = vmatpush1.msra.mxu0 0.0
        %700 = vmatprep.subr.mxu0 0.0
        %701 = vmatpush1.msra.mxu0 0.0
        %702 = vmatprep.subr.mxu0 0.0
        %703 = vmatpush1.msra.mxu0 0.0
        %704 = vmatprep.subr.mxu0 0.0
        %705 = vmatpush1.msra.mxu0 0.0
        %706 = vmatprep.subr.mxu0 0.0
        %707 = vmatpush1.msra.mxu0 0.0
        %708 = vmatprep.mubr.f32.mxu0 0.0
        %709 = vmatmul.mubr.f32.gmra.mrb[0].mxu0 %v642
        %v710 = vpop.f32.mrb[0].mxu0
        %v711 = vadd.f32 %v636, %v710
        %v712 = vpop.f32.mrb[0].mxu0
        %713 = vdwg.mxu0
        %v714 = vmax.f32 %v711, 0.0
        %715 = vst [vmem:[%s437] sm:$0xff] %v714
        %s716 = sand.u32 %s230, 1
        %s717 = scalar_lea.sflag [#allocation4], %s716
        %s718 = sand.u32 %s230, 1
        %s719 = smul.addr %s718, 8
        %s720 = scalar_lea.vmem [#allocation11], %s719
        // Predicated region
        $region69: #{tpu_custom_call.1} parent=47 // pred_check
          %p721 = pneg %p240
        $region70: #{tpu_custom_call.1} parent=47 // pred_check_branch
          %723 = sbr.rel (%p721) target = $region72
        $region71: #{tpu_custom_call.1} parent=47 // pred_region
          %s725 = ssub.s32 128, 128
          %726 = vsyncadd %s717, %s725
          %s727 = smul.addr %s32, 2
          %s728 = sadd.s32 %s33, %s727
          %s729 = smul.addr %s728, 128
          %s730 = scalar_lea.hbm %s7, %s729
          %s732 = sshll.u32 %s720, 4
          %s733 = int_to_ptr.vmem [resolvable:$true] %s732
          %735 = dma.vmem_to_hbm [thread:$0]  %s733, 128, %s730, %s717
        $region72: #{tpu_custom_call.1} parent=47 // pred_fallthru
          _
      $region48: #{tpu_custom_call.1} parent=5 // pred_fallthru
        _
      %p736 = scmp.le.s32.totalorder 2, %s23
      // Predicated region
      $region73: #{tpu_custom_call.1} parent=5 // pred_check
        %p737 = pneg %p736
      $region74: #{tpu_custom_call.1} parent=5 // pred_check_branch
        %739 = sbr.rel (%p737) target = $region76
      $region75: #{tpu_custom_call.1} parent=5 // pred_region
        %s740 = ssub.s32 %s23, 2
        // Predicated region
        $region77: #{tpu_custom_call.1} parent=75 // pred_check
          %p741 = pneg %p246
        $region78: #{tpu_custom_call.1} parent=75 // pred_check_branch
          %743 = sbr.rel (%p741) target = $region80
        $region79: #{tpu_custom_call.1} parent=75 // pred_region
          %s744 = sand.u32 %s231, 1
          %s745 = scalar_lea.sflag [#allocation4], %s744
          %s746 = sand.u32 %s231, 1
          %s747 = smul.addr %s746, 8
          %s748 = scalar_lea.vmem [#allocation11], %s747
          %749 = dma.done %s745, 128
        $region80: #{tpu_custom_call.1} parent=75 // pred_fallthru
          _
      $region76: #{tpu_custom_call.1} parent=5 // pred_fallthru
        _
    $region6: #{tpu_custom_call.1} parent=1 // loop_footer
      %s27 = sadd.s32 1, %s23
    $region7: #{tpu_custom_call.1} parent=1 // loop_footer_branch
      %22 = sbr.rel target = $region3
    $region8: #{tpu_custom_call.1} parent=1 // loop_exit
      _
    %750 = vsyncpa [#allocation3], 1
    %s751 = scalar_lea.sflag [#allocation3], 1
    %752 = vsyncpa %s751, 1
    %753 = vsyncpa [#allocation6], 1
    %s754 = scalar_lea.sflag [#allocation6], 1
    %755 = vsyncpa %s754, 1
    %756 = vsyncpa [#allocation9], 1
    %757 = vsyncpa [#allocation4], 1
    %s758 = scalar_lea.sflag [#allocation4], 1
    %759 = vsyncpa %s758, 1

</llo_original>
